<compile_context>
chip_gen: v7x
topology: tpu7x:2x2x1
jax: 0.10.0
libtpu: 0.0.40
codegen_flags: <defaults>
</compile_context>

<pallas_src>
import jax
import jax.numpy as jnp
from jax import lax
from jax.experimental import pallas as pl
from jax.experimental.pallas import tpu as pltpu

HIDDEN = 128
IN_F = 4
OUT_F = 2
BATCH = 8            # one state block = 8 rows; softmax is over these 8 rows (dim=0)
N_STACKED = 6        # fc2..fc6 (5 hidden layers) + fc7 (zero-padded to 128 out rows)
E_MAX = 128          # max envs per grid step -> M = 8*E = 1024 rows per matmul


def policy_kernel(x_ref, w1_ref, b1_ref, w_ref, b_ref, out_ref):
    # Feature-major domain: activations are (features, rows), rows m = b*E + e
    # (b = row inside the 8-row block, e = env index within this chunk).
    #   x_ref:   (4, M)        f32
    #   w1_ref:  (128, 4)      f32   fc1 weight, (out, in) layout
    #   b1_ref:  (128, 1)      f32
    #   w_ref:   (6, 128, 128) bf16  fc2..fc7 weights, (out, in); fc7 rows 2..127 zero
    #   b_ref:   (6, 128, 1)   f32   fc2..fc7 biases;  fc7 rows 2..127 zero
    #   out_ref: (8, 2, E)     f32   probs[b, o, e]  (env axis on lanes -> dense stores)
    E = out_ref.shape[-1]

    x = x_ref[...]                                   # (4, M) f32
    w1 = w1_ref[...]                                 # (128, 4) f32

    # fc1 on the VPU: 4 broadcast multiply-adds (outer products), all in f32
    # (avoids a 97%-zero K=4 MXU matmul; v5e's VPU has no bf16 so keep f32).
    h = (b1_ref[...]
         + w1[:, 0:1] * x[0:1, :]
         + w1[:, 1:2] * x[1:2, :]
         + w1[:, 2:3] * x[2:3, :]
         + w1[:, 3:4] * x[3:4, :])                   # (128, M) f32
    h = jnp.maximum(h, 0.0).astype(w_ref.dtype)      # bf16 MXU operand

    # fc2..fc6 + relu. fori_loop (not unrolled) keeps a single 128x128 weight
    # tile live at a time; bf16 operands, f32 accumulation on the MXU.
    def hidden_layer(i, hc):
        y = jnp.dot(w_ref[i], hc, preferred_element_type=jnp.float32) + b_ref[i]
        return jnp.maximum(y, 0.0).astype(w_ref.dtype)

    h = lax.fori_loop(0, N_STACKED - 1, hidden_layer, h)          # (128, M) bf16

    # fc7 (stacked index 5, zero-padded to 128 output rows); keep the 2 real rows.
    y7 = jnp.dot(w_ref[N_STACKED - 1], h, preferred_element_type=jnp.float32)
    logits = y7[:OUT_F, :] + b_ref[N_STACKED - 1][:OUT_F, :]      # (2, M) f32

    # softmax over dim=0 of each 8-row block. Rows are laid out b-major
    # (m = b*E + e), so the 8 members of each block sit at the same lane of the
    # 8 slices below -> the reduction is plain full-vreg VPU max/add.
    parts = [logits[:, b * E:(b + 1) * E] for b in range(BATCH)]  # 8 x (2, E)
    mx = parts[0]
    for b in range(1, BATCH):
        mx = jnp.maximum(mx, parts[b])
    exps = [jnp.exp(p - mx) for p in parts]
    s = exps[0]
    for b in range(1, BATCH):
        s = s + exps[b]
    inv = pl.reciprocal(s, approx=True)                            # EUP slot, ~free
    for b in range(BATCH):
        out_ref[b] = exps[b] * inv                                 # lane-dense (2, E) store


def pack_params(params, matmul_dtype=jnp.bfloat16):
    """One-time packing of the 7 (W, b) pairs into kernel-friendly arrays.

    Raw params store W as (in_features, out_features); the kernel works in the
    transposed (feature-major) domain, so weights are re-laid-out to (out, in),
    fc7 is zero-padded to 128 output rows, fc2..fc7 are stacked, and the MXU
    operands are cast to bf16 (accumulation stays f32 inside the dot).
    Do this at init, NOT per forward call."""
    (w1, b1) = params[0]
    hidden = params[1:-1]                  # fc2..fc6
    (w7, b7) = params[-1]

    w7_t = jnp.zeros((HIDDEN, HIDDEN), jnp.float32).at[:OUT_F, :].set(w7.T)
    b7_p = jnp.zeros((HIDDEN,), jnp.float32).at[:OUT_F].set(b7)

    w_stack = jnp.stack([w.T for (w, _) in hidden] + [w7_t])       # (6, 128, 128)
    b_stack = jnp.stack([b for (_, b) in hidden] + [b7_p])         # (6, 128)

    return {
        "w1": w1.T.astype(jnp.float32),                            # (128, 4)  f32
        "b1": b1.reshape(HIDDEN, 1).astype(jnp.float32),           # (128, 1)  f32
        "w": w_stack.astype(matmul_dtype),                         # (6,128,128) bf16
        "b": b_stack.reshape(N_STACKED, HIDDEN, 1).astype(jnp.float32),  # (6,128,1) f32
    }


def _round_up(a, b):
    return -(-a // b) * b


def _choose_env_chunk(num_envs):
    """Envs processed per grid step (E). Large E -> M = 8*E rows per matmul
    (amortizes MXU weight pushes, grid overhead and DMAs), but keep >= 2 grid
    steps whenever possible so v7x's two TensorCores both get work."""
    if num_envs >= 2 * E_MAX:
        return E_MAX
    if num_envs >= 32:
        # >= 2 chunks, E a multiple of 16 so M = 8*E is lane-tile aligned.
        return min(E_MAX, _round_up(-(-num_envs // 2), 16))
    if num_envs >= 2:
        return max(1, num_envs // 2)
    return 1


def policy_forward(x, packed):
    """x: (num_envs, 8, 4) or (8, 4) float32.
    Returns softmax(fc7(...), dim=0 of each 8-row block): (num_envs, 8, 2) or (8, 2)."""
    squeeze = (x.ndim == 2)
    if squeeze:
        x = x[None]
    num_envs = x.shape[0]
    assert x.shape[1] == BATCH and x.shape[2] == IN_F, \
        "kernel is specialized to (8, 4) state blocks (softmax over dim=0)"

    E = _choose_env_chunk(num_envs)
    num_padded = _round_up(num_envs, E)
    num_chunks = num_padded // E
    M = E * BATCH                                    # rows per grid step

    # Pad to a whole number of chunks and permute to the feature-major layout
    # the kernel consumes: xt[c, i, b*E + e] = x[c*E + e, b, i]. (Cheap XLA ops.)
    xp = jnp.zeros((num_padded, BATCH, IN_F), jnp.float32).at[:num_envs].set(
        x.astype(jnp.float32))
    xt = (xp.reshape(num_chunks, E, BATCH, IN_F)
            .transpose(0, 3, 2, 1)
            .reshape(num_chunks, IN_F, M))

    rows = num_chunks * M
    flops = 2 * rows * (IN_F * HIDDEN + N_STACKED * HIDDEN * HIDDEN)
    bytes_accessed = (4 * rows * (IN_F + OUT_F)
                      + 2 * N_STACKED * HIDDEN * HIDDEN
                      + 4 * (N_STACKED + 1) * HIDDEN
                      + 4 * HIDDEN * IN_F)

    out = pl.pallas_call(
        policy_kernel,
        out_shape=jax.ShapeDtypeStruct((num_chunks, BATCH, OUT_F, E), jnp.float32),
        grid=(num_chunks,),
        in_specs=[
            pl.BlockSpec((None, IN_F, M), lambda c: (c, 0, 0)),              # x chunk
            pl.BlockSpec((HIDDEN, IN_F), lambda c: (0, 0)),                  # w1 (resident)
            pl.BlockSpec((HIDDEN, 1), lambda c: (0, 0)),                     # b1 (resident)
            pl.BlockSpec((N_STACKED, HIDDEN, HIDDEN), lambda c: (0, 0, 0)),  # w2..w7 (resident)
            pl.BlockSpec((N_STACKED, HIDDEN, 1), lambda c: (0, 0, 0)),       # b2..b7 (resident)
        ],
        out_specs=pl.BlockSpec((None, BATCH, OUT_F, E), lambda c: (c, 0, 0, 0)),
        compiler_params=pltpu.CompilerParams(
            dimension_semantics=("parallel",)),           # v7x: shard chunks over 2 TCs
        cost_estimate=pl.CostEstimate(
            flops=flops,
            transcendentals=rows * OUT_F,
            bytes_accessed=bytes_accessed),
    )(xt, packed["w1"], packed["b1"], packed["w"], packed["b"])

    # out[c, b, o, e] -> (env, b, o); drop padded envs. (Cheap XLA ops on tiny data.)
    res = out.transpose(0, 3, 1, 2).reshape(num_padded, BATCH, OUT_F)[:num_envs]
    return res[0] if squeeze else res


def init_params(key):
    """Deterministic init mimicking PyTorch Linear default (U[-1/sqrt(in), 1/sqrt(in)]).
    Weights stored as (in_features, out_features) so the reference computes x @ W + b."""
    dims = [(IN_F, HIDDEN)] + [(HIDDEN, HIDDEN)] * 5 + [(HIDDEN, OUT_F)]
    params = []
    for (fan_in, fan_out) in dims:
        key, kw, kb = jax.random.split(key, 3)
        bound = 1.0 / jnp.sqrt(fan_in)
        w = jax.random.uniform(kw, (fan_in, fan_out), jnp.float32, -bound, bound)
        b = jax.random.uniform(kb, (fan_out,), jnp.float32, -bound, bound)
        params.append((w, b))
    return params


def policy_forward_ref(x, params):
    """Pure-JAX f32 reference matching the PyTorch forward exactly (x: (8, 4))."""
    h = x
    for (w, b) in params[:-1]:
        h = jnp.maximum(h @ w + b, 0.0)
    w7, b7 = params[-1]
    logits = h @ w7 + b7
    return jax.nn.softmax(logits, axis=0)     # dim=0, as in the PyTorch module

# TODO(synk): Policy.train() (REINFORCE update), the Adam optimizer and the
# Categorical action sampling are training-time utilities outside the forward
# pass and are not implemented as Pallas kernels.


if __name__ == "__main__":
    key = jax.random.PRNGKey(0)
    key, kx1, kx2 = jax.random.split(key, 3)
    params = init_params(key)
    packed = pack_params(params)              # one-time packing (hoisted out of forward)

    fwd = jax.jit(policy_forward)
    ref_batched = jax.vmap(lambda xe: policy_forward_ref(xe, params))

    # bf16 MXU operands (f32 accumulation) -> compare against the f32 reference
    # with a loosened tolerance, as suggested in the perf review.
    TOL = dict(atol=2e-2, rtol=2e-2)

    # Small batched-env path: E=2 -> 2 grid steps (exercises the multi-chunk path).
    x_small = jax.random.normal(kx1, (4, BATCH, IN_F), jnp.float32)
    out_small = jax.block_until_ready(fwd(x_small, packed))
    assert out_small.shape == (4, BATCH, OUT_F)
    assert jnp.allclose(out_small, ref_batched(x_small), **TOL)

    # Larger batched-env path: E=128 (M=1024 rows/step), 3 chunks incl. padding.
    x_big = jax.random.normal(kx2, (320, BATCH, IN_F), jnp.float32)
    out_big = jax.block_until_ready(fwd(x_big, packed))
    assert out_big.shape == (320, BATCH, OUT_F)
    assert jnp.allclose(out_big, ref_batched(x_big), **TOL)

    # Single (8, 4) block -- exactly the PyTorch module call.
    out1 = jax.block_until_ready(fwd(x_small[0], packed))
    assert out1.shape == (BATCH, OUT_F)
    assert jnp.allclose(out1, policy_forward_ref(x_small[0], params), **TOL)

    print("KERNEL_OK")
</pallas_src>

<mosaic_0001>
module attributes {stable_mosaic.version = 11 : i64} {
  func.func @policy_kernel(%arg0: i32, %arg1: memref<1x4x16xf32, #tpu.memory_space<vmem>>, %arg2: memref<128x4xf32, #tpu.memory_space<vmem>>, %arg3: memref<128x1xf32, #tpu.memory_space<vmem>>, %arg4: memref<6x128x128xbf16, #tpu.memory_space<vmem>>, %arg5: memref<6x128x1xf32, #tpu.memory_space<vmem>>, %arg6: memref<1x8x2x2xf32, #tpu.memory_space<vmem>>) attributes {dimension_semantics = [#tpu.dimension_semantics<parallel>], iteration_bounds = array<i64: 2>, scalar_prefetch = 0 : i64, scratch_operands = 0 : i64, tpu.core_type = #tpu.core_type<tc>, window_params = [{transform_indices = @transform_0, window_bounds = array<i64: 1, 4, 16>}, {pipeline_mode = #tpu.pipeline_mode<synchronous>, transform_indices = @transform_1, window_bounds = array<i64: 128, 4>}, {pipeline_mode = #tpu.pipeline_mode<synchronous>, transform_indices = @transform_2, window_bounds = array<i64: 128, 1>}, {pipeline_mode = #tpu.pipeline_mode<synchronous>, transform_indices = @transform_3, window_bounds = array<i64: 6, 128, 128>}, {pipeline_mode = #tpu.pipeline_mode<synchronous>, transform_indices = @transform_4, window_bounds = array<i64: 6, 128, 1>}, {transform_indices = @transform_5, window_bounds = array<i64: 1, 8, 2, 2>}]} {
    %c0 = arith.constant 0 : index
    %c0_0 = arith.constant 0 : index
    %c0_1 = arith.constant 0 : index
    %0 = vector.load %arg1[%c0, %c0_0, %c0_1] : memref<1x4x16xf32, #tpu.memory_space<vmem>>, vector<1x4x16xf32>
    %1 = vector.shape_cast %0 : vector<1x4x16xf32> to vector<4x16xf32>
    %c0_2 = arith.constant 0 : index
    %c0_3 = arith.constant 0 : index
    %2 = vector.load %arg2[%c0_2, %c0_3] : memref<128x4xf32, #tpu.memory_space<vmem>>, vector<128x4xf32>
    %c0_4 = arith.constant 0 : index
    %c0_5 = arith.constant 0 : index
    %3 = vector.load %arg3[%c0_4, %c0_5] : memref<128x1xf32, #tpu.memory_space<vmem>>, vector<128x1xf32>
    %4 = vector.extract_strided_slice %2 {offsets = [0, 0], sizes = [128, 1], strides = [1, 1]} : vector<128x4xf32> to vector<128x1xf32>
    %5 = vector.extract_strided_slice %1 {offsets = [0, 0], sizes = [1, 16], strides = [1, 1]} : vector<4x16xf32> to vector<1x16xf32>
    %6 = vector.broadcast %4 : vector<128x1xf32> to vector<128x16xf32>
    %7 = vector.broadcast %5 : vector<1x16xf32> to vector<128x16xf32>
    %8 = arith.mulf %6, %7 : vector<128x16xf32>
    %9 = vector.broadcast %3 : vector<128x1xf32> to vector<128x16xf32>
    %10 = arith.addf %9, %8 : vector<128x16xf32>
    %11 = vector.extract_strided_slice %2 {offsets = [0, 1], sizes = [128, 1], strides = [1, 1]} : vector<128x4xf32> to vector<128x1xf32>
    %12 = vector.extract_strided_slice %1 {offsets = [1, 0], sizes = [1, 16], strides = [1, 1]} : vector<4x16xf32> to vector<1x16xf32>
    %13 = vector.broadcast %11 : vector<128x1xf32> to vector<128x16xf32>
    %14 = vector.broadcast %12 : vector<1x16xf32> to vector<128x16xf32>
    %15 = arith.mulf %13, %14 : vector<128x16xf32>
    %16 = arith.addf %10, %15 : vector<128x16xf32>
    %17 = vector.extract_strided_slice %2 {offsets = [0, 2], sizes = [128, 1], strides = [1, 1]} : vector<128x4xf32> to vector<128x1xf32>
    %18 = vector.extract_strided_slice %1 {offsets = [2, 0], sizes = [1, 16], strides = [1, 1]} : vector<4x16xf32> to vector<1x16xf32>
    %19 = vector.broadcast %17 : vector<128x1xf32> to vector<128x16xf32>
    %20 = vector.broadcast %18 : vector<1x16xf32> to vector<128x16xf32>
    %21 = arith.mulf %19, %20 : vector<128x16xf32>
    %22 = arith.addf %16, %21 : vector<128x16xf32>
    %23 = vector.extract_strided_slice %2 {offsets = [0, 3], sizes = [128, 1], strides = [1, 1]} : vector<128x4xf32> to vector<128x1xf32>
    %24 = vector.extract_strided_slice %1 {offsets = [3, 0], sizes = [1, 16], strides = [1, 1]} : vector<4x16xf32> to vector<1x16xf32>
    %25 = vector.broadcast %23 : vector<128x1xf32> to vector<128x16xf32>
    %26 = vector.broadcast %24 : vector<1x16xf32> to vector<128x16xf32>
    %27 = arith.mulf %25, %26 : vector<128x16xf32>
    %28 = arith.addf %22, %27 : vector<128x16xf32>
    %cst = arith.constant 0.000000e+00 : f32
    %29 = vector.broadcast %cst : f32 to vector<128x16xf32>
    %30 = arith.maximumf %28, %29 : vector<128x16xf32>
    %31 = arith.truncf %30 : vector<128x16xf32> to vector<128x16xbf16>
    %c0_i32 = arith.constant 0 : i32
    %c5_i32 = arith.constant 5 : i32
    %32 = arith.addi %c0_i32, %c5_i32 : i32
    %c1_i32 = arith.constant 1 : i32
    %33 = scf.for %arg7 = %c0_i32 to %32 step %c1_i32 iter_args(%arg8 = %31) -> (vector<128x16xbf16>)  : i32 {
      %114 = arith.index_cast %arg7 : i32 to index
      %c0_39 = arith.constant 0 : index
      %c0_40 = arith.constant 0 : index
      %115 = vector.load %arg4[%114, %c0_39, %c0_40] : memref<6x128x128xbf16, #tpu.memory_space<vmem>>, vector<1x128x128xbf16>
      %116 = vector.shape_cast %115 : vector<1x128x128xbf16> to vector<128x128xbf16>
      %cst_41 = arith.constant dense<0.000000e+00> : vector<128x16xf32>
      %117 = tpu.matmul %116, %arg8, %cst_41 {dimension_numbers = #tpu.dot_dimension_numbers<[1], [0], [0], [1], [0, 0, 1, 1], [], []>} : vector<128x128xbf16>, vector<128x16xbf16>, vector<128x16xf32> -> vector<128x16xf32>
      %118 = arith.index_cast %arg7 : i32 to index
      %c0_42 = arith.constant 0 : index
      %c0_43 = arith.constant 0 : index
      %119 = vector.load %arg5[%118, %c0_42, %c0_43] : memref<6x128x1xf32, #tpu.memory_space<vmem>>, vector<1x128x1xf32>
      %120 = vector.shape_cast %119 : vector<1x128x1xf32> to vector<128x1xf32>
      %121 = vector.broadcast %120 : vector<128x1xf32> to vector<128x16xf32>
      %122 = arith.addf %117, %121 : vector<128x16xf32>
      %cst_44 = arith.constant 0.000000e+00 : f32
      %123 = vector.broadcast %cst_44 : f32 to vector<128x16xf32>
      %124 = arith.maximumf %122, %123 : vector<128x16xf32>
      %125 = arith.truncf %124 : vector<128x16xf32> to vector<128x16xbf16>
      scf.yield %125 : vector<128x16xbf16>
    }
    %c5_i32_6 = arith.constant 5 : i32
    %c5 = arith.constant 5 : index
    %c0_7 = arith.constant 0 : index
    %c0_8 = arith.constant 0 : index
    %34 = vector.load %arg4[%c5, %c0_7, %c0_8] : memref<6x128x128xbf16, #tpu.memory_space<vmem>>, vector<1x128x128xbf16>
    %35 = vector.shape_cast %34 : vector<1x128x128xbf16> to vector<128x128xbf16>
    %cst_9 = arith.constant dense<0.000000e+00> : vector<128x16xf32>
    %36 = tpu.matmul %35, %33, %cst_9 {dimension_numbers = #tpu.dot_dimension_numbers<[1], [0], [0], [1], [0, 0, 1, 1], [], []>} : vector<128x128xbf16>, vector<128x16xbf16>, vector<128x16xf32> -> vector<128x16xf32>
    %37 = vector.extract_strided_slice %36 {offsets = [0, 0], sizes = [2, 16], strides = [1, 1]} : vector<128x16xf32> to vector<2x16xf32>
    %c5_10 = arith.constant 5 : index
    %c0_11 = arith.constant 0 : index
    %c0_12 = arith.constant 0 : index
    %38 = vector.load %arg5[%c5_10, %c0_11, %c0_12] : memref<6x128x1xf32, #tpu.memory_space<vmem>>, vector<1x128x1xf32>
    %39 = vector.shape_cast %38 : vector<1x128x1xf32> to vector<128x1xf32>
    %40 = vector.extract_strided_slice %39 {offsets = [0, 0], sizes = [2, 1], strides = [1, 1]} : vector<128x1xf32> to vector<2x1xf32>
    %41 = vector.broadcast %40 : vector<2x1xf32> to vector<2x16xf32>
    %42 = arith.addf %37, %41 : vector<2x16xf32>
    %43 = vector.extract_strided_slice %42 {offsets = [0, 0], sizes = [2, 2], strides = [1, 1]} : vector<2x16xf32> to vector<2x2xf32>
    %44 = vector.extract_strided_slice %42 {offsets = [0, 2], sizes = [2, 2], strides = [1, 1]} : vector<2x16xf32> to vector<2x2xf32>
    %45 = vector.extract_strided_slice %42 {offsets = [0, 4], sizes = [2, 2], strides = [1, 1]} : vector<2x16xf32> to vector<2x2xf32>
    %46 = vector.extract_strided_slice %42 {offsets = [0, 6], sizes = [2, 2], strides = [1, 1]} : vector<2x16xf32> to vector<2x2xf32>
    %47 = vector.extract_strided_slice %42 {offsets = [0, 8], sizes = [2, 2], strides = [1, 1]} : vector<2x16xf32> to vector<2x2xf32>
    %48 = vector.extract_strided_slice %42 {offsets = [0, 10], sizes = [2, 2], strides = [1, 1]} : vector<2x16xf32> to vector<2x2xf32>
    %49 = vector.extract_strided_slice %42 {offsets = [0, 12], sizes = [2, 2], strides = [1, 1]} : vector<2x16xf32> to vector<2x2xf32>
    %50 = vector.extract_strided_slice %42 {offsets = [0, 14], sizes = [2, 2], strides = [1, 1]} : vector<2x16xf32> to vector<2x2xf32>
    %51 = arith.maximumf %43, %44 : vector<2x2xf32>
    %52 = arith.maximumf %51, %45 : vector<2x2xf32>
    %53 = arith.maximumf %52, %46 : vector<2x2xf32>
    %54 = arith.maximumf %53, %47 : vector<2x2xf32>
    %55 = arith.maximumf %54, %48 : vector<2x2xf32>
    %56 = arith.maximumf %55, %49 : vector<2x2xf32>
    %57 = arith.maximumf %56, %50 : vector<2x2xf32>
    %58 = arith.subf %43, %57 : vector<2x2xf32>
    %59 = math.exp %58 : vector<2x2xf32>
    %60 = arith.subf %44, %57 : vector<2x2xf32>
    %61 = math.exp %60 : vector<2x2xf32>
    %62 = arith.subf %45, %57 : vector<2x2xf32>
    %63 = math.exp %62 : vector<2x2xf32>
    %64 = arith.subf %46, %57 : vector<2x2xf32>
    %65 = math.exp %64 : vector<2x2xf32>
    %66 = arith.subf %47, %57 : vector<2x2xf32>
    %67 = math.exp %66 : vector<2x2xf32>
    %68 = arith.subf %48, %57 : vector<2x2xf32>
    %69 = math.exp %68 : vector<2x2xf32>
    %70 = arith.subf %49, %57 : vector<2x2xf32>
    %71 = math.exp %70 : vector<2x2xf32>
    %72 = arith.subf %50, %57 : vector<2x2xf32>
    %73 = math.exp %72 : vector<2x2xf32>
    %74 = arith.addf %59, %61 : vector<2x2xf32>
    %75 = arith.addf %74, %63 : vector<2x2xf32>
    %76 = arith.addf %75, %65 : vector<2x2xf32>
    %77 = arith.addf %76, %67 : vector<2x2xf32>
    %78 = arith.addf %77, %69 : vector<2x2xf32>
    %79 = arith.addf %78, %71 : vector<2x2xf32>
    %80 = arith.addf %79, %73 : vector<2x2xf32>
    %81 = tpu.reciprocal %80 {approx = true} : vector<2x2xf32> -> vector<2x2xf32>
    %82 = arith.mulf %59, %81 : vector<2x2xf32>
    %c0_13 = arith.constant 0 : index
    %c0_14 = arith.constant 0 : index
    %c0_15 = arith.constant 0 : index
    %c0_16 = arith.constant 0 : index
    %83 = vector.load %arg6[%c0_13, %c0_14, %c0_15, %c0_16] : memref<1x8x2x2xf32, #tpu.memory_space<vmem>>, vector<1x1x2x2xf32>
    %84 = vector.shape_cast %83 : vector<1x1x2x2xf32> to vector<2x2xf32>
    %85 = vector.shape_cast %82 : vector<2x2xf32> to vector<1x1x2x2xf32>
    tpu.vector_store %arg6[%c0_13, %c0_14, %c0_15, %c0_16], %85 {strides = array<i32>} : memref<1x8x2x2xf32, #tpu.memory_space<vmem>>, vector<1x1x2x2xf32>,
    %86 = arith.mulf %61, %81 : vector<2x2xf32>
    %c0_17 = arith.constant 0 : index
    %c1 = arith.constant 1 : index
    %c0_18 = arith.constant 0 : index
    %c0_19 = arith.constant 0 : index
    %87 = vector.load %arg6[%c0_17, %c1, %c0_18, %c0_19] : memref<1x8x2x2xf32, #tpu.memory_space<vmem>>, vector<1x1x2x2xf32>
    %88 = vector.shape_cast %87 : vector<1x1x2x2xf32> to vector<2x2xf32>
    %89 = vector.shape_cast %86 : vector<2x2xf32> to vector<1x1x2x2xf32>
    tpu.vector_store %arg6[%c0_17, %c1, %c0_18, %c0_19], %89 {strides = array<i32>} : memref<1x8x2x2xf32, #tpu.memory_space<vmem>>, vector<1x1x2x2xf32>,
    %90 = arith.mulf %63, %81 : vector<2x2xf32>
    %c0_20 = arith.constant 0 : index
    %c2 = arith.constant 2 : index
    %c0_21 = arith.constant 0 : index
    %c0_22 = arith.constant 0 : index
    %91 = vector.load %arg6[%c0_20, %c2, %c0_21, %c0_22] : memref<1x8x2x2xf32, #tpu.memory_space<vmem>>, vector<1x1x2x2xf32>
    %92 = vector.shape_cast %91 : vector<1x1x2x2xf32> to vector<2x2xf32>
    %93 = vector.shape_cast %90 : vector<2x2xf32> to vector<1x1x2x2xf32>
    tpu.vector_store %arg6[%c0_20, %c2, %c0_21, %c0_22], %93 {strides = array<i32>} : memref<1x8x2x2xf32, #tpu.memory_space<vmem>>, vector<1x1x2x2xf32>,
    %94 = arith.mulf %65, %81 : vector<2x2xf32>
    %c0_23 = arith.constant 0 : index
    %c3 = arith.constant 3 : index
    %c0_24 = arith.constant 0 : index
    %c0_25 = arith.constant 0 : index
    %95 = vector.load %arg6[%c0_23, %c3, %c0_24, %c0_25] : memref<1x8x2x2xf32, #tpu.memory_space<vmem>>, vector<1x1x2x2xf32>
    %96 = vector.shape_cast %95 : vector<1x1x2x2xf32> to vector<2x2xf32>
    %97 = vector.shape_cast %94 : vector<2x2xf32> to vector<1x1x2x2xf32>
    tpu.vector_store %arg6[%c0_23, %c3, %c0_24, %c0_25], %97 {strides = array<i32>} : memref<1x8x2x2xf32, #tpu.memory_space<vmem>>, vector<1x1x2x2xf32>,
    %98 = arith.mulf %67, %81 : vector<2x2xf32>
    %c0_26 = arith.constant 0 : index
    %c4 = arith.constant 4 : index
    %c0_27 = arith.constant 0 : index
    %c0_28 = arith.constant 0 : index
    %99 = vector.load %arg6[%c0_26, %c4, %c0_27, %c0_28] : memref<1x8x2x2xf32, #tpu.memory_space<vmem>>, vector<1x1x2x2xf32>
    %100 = vector.shape_cast %99 : vector<1x1x2x2xf32> to vector<2x2xf32>
    %101 = vector.shape_cast %98 : vector<2x2xf32> to vector<1x1x2x2xf32>
    tpu.vector_store %arg6[%c0_26, %c4, %c0_27, %c0_28], %101 {strides = array<i32>} : memref<1x8x2x2xf32, #tpu.memory_space<vmem>>, vector<1x1x2x2xf32>,
    %102 = arith.mulf %69, %81 : vector<2x2xf32>
    %c0_29 = arith.constant 0 : index
    %c5_30 = arith.constant 5 : index
    %c0_31 = arith.constant 0 : index
    %c0_32 = arith.constant 0 : index
    %103 = vector.load %arg6[%c0_29, %c5_30, %c0_31, %c0_32] : memref<1x8x2x2xf32, #tpu.memory_space<vmem>>, vector<1x1x2x2xf32>
    %104 = vector.shape_cast %103 : vector<1x1x2x2xf32> to vector<2x2xf32>
    %105 = vector.shape_cast %102 : vector<2x2xf32> to vector<1x1x2x2xf32>
    tpu.vector_store %arg6[%c0_29, %c5_30, %c0_31, %c0_32], %105 {strides = array<i32>} : memref<1x8x2x2xf32, #tpu.memory_space<vmem>>, vector<1x1x2x2xf32>,
    %106 = arith.mulf %71, %81 : vector<2x2xf32>
    %c0_33 = arith.constant 0 : index
    %c6 = arith.constant 6 : index
    %c0_34 = arith.constant 0 : index
    %c0_35 = arith.constant 0 : index
    %107 = vector.load %arg6[%c0_33, %c6, %c0_34, %c0_35] : memref<1x8x2x2xf32, #tpu.memory_space<vmem>>, vector<1x1x2x2xf32>
    %108 = vector.shape_cast %107 : vector<1x1x2x2xf32> to vector<2x2xf32>
    %109 = vector.shape_cast %106 : vector<2x2xf32> to vector<1x1x2x2xf32>
    tpu.vector_store %arg6[%c0_33, %c6, %c0_34, %c0_35], %109 {strides = array<i32>} : memref<1x8x2x2xf32, #tpu.memory_space<vmem>>, vector<1x1x2x2xf32>,
    %110 = arith.mulf %73, %81 : vector<2x2xf32>
    %c0_36 = arith.constant 0 : index
    %c7 = arith.constant 7 : index
    %c0_37 = arith.constant 0 : index
    %c0_38 = arith.constant 0 : index
    %111 = vector.load %arg6[%c0_36, %c7, %c0_37, %c0_38] : memref<1x8x2x2xf32, #tpu.memory_space<vmem>>, vector<1x1x2x2xf32>
    %112 = vector.shape_cast %111 : vector<1x1x2x2xf32> to vector<2x2xf32>
    %113 = vector.shape_cast %110 : vector<2x2xf32> to vector<1x1x2x2xf32>
    tpu.vector_store %arg6[%c0_36, %c7, %c0_37, %c0_38], %113 {strides = array<i32>} : memref<1x8x2x2xf32, #tpu.memory_space<vmem>>, vector<1x1x2x2xf32>,
    return
  }
  func.func @transform_0(%arg0: i32) -> (i32, i32, i32) {
    %c0_i32 = arith.constant 0 : i32
    %c0_i32_0 = arith.constant 0 : i32
    %c0_i32_1 = arith.constant 0 : i32
    return %arg0, %c0_i32, %c0_i32_0 : i32, i32, i32
  }
  func.func @transform_1(%arg0: i32) -> (i32, i32) {
    %c0_i32 = arith.constant 0 : i32
    %c0_i32_0 = arith.constant 0 : i32
    %c0_i32_1 = arith.constant 0 : i32
    return %c0_i32, %c0_i32_0 : i32, i32
  }
  func.func @transform_2(%arg0: i32) -> (i32, i32) {
    %c0_i32 = arith.constant 0 : i32
    %c0_i32_0 = arith.constant 0 : i32
    %c0_i32_1 = arith.constant 0 : i32
    return %c0_i32, %c0_i32_0 : i32, i32
  }
  func.func @transform_3(%arg0: i32) -> (i32, i32, i32) {
    %c0_i32 = arith.constant 0 : i32
    %c0_i32_0 = arith.constant 0 : i32
    %c0_i32_1 = arith.constant 0 : i32
    %c0_i32_2 = arith.constant 0 : i32
    return %c0_i32, %c0_i32_0, %c0_i32_1 : i32, i32, i32
  }
  func.func @transform_4(%arg0: i32) -> (i32, i32, i32) {
    %c0_i32 = arith.constant 0 : i32
    %c0_i32_0 = arith.constant 0 : i32
    %c0_i32_1 = arith.constant 0 : i32
    %c0_i32_2 = arith.constant 0 : i32
    return %c0_i32, %c0_i32_0, %c0_i32_1 : i32, i32, i32
  }
  func.func @transform_5(%arg0: i32) -> (i32, i32, i32, i32) {
    %c0_i32 = arith.constant 0 : i32
    %c0_i32_0 = arith.constant 0 : i32
    %c0_i32_1 = arith.constant 0 : i32
    %c0_i32_2 = arith.constant 0 : i32
    return %arg0, %c0_i32, %c0_i32_0, %c0_i32_1 : i32, i32, i32, i32
  }
}

</mosaic_0001>

<llo_original>
// kernel: policy_forward.1
$region0: #{policy_forward.1}
  #allocation0 [shape = 'u32[]', space=smem, size = 0x4, offset = 0x4, fixed_abs, tag = 'smem constant byte address 0x4 - core index']
  #allocation1 [shape = 'u32[144,128]{1,0:T(1,128)}', space=vmem, size = 0x12000, scoped, tag = 'internal scratch']
  %s0 = inlined_call_operand.vmem [shape: f32[2,4,16], index: 0, kind: input, shape index: {}]
  %s1 = inlined_call_operand.vmem [shape: f32[128,4], index: 1, kind: input, shape index: {}]
  %s2 = inlined_call_operand.vmem [shape: f32[128,1], index: 2, kind: input, shape index: {}]
  %s3 = inlined_call_operand.vmem [shape: bf16[6,128,128], index: 3, kind: input, shape index: {}]
  %s4 = inlined_call_operand.vmem [shape: f32[6,128,1], index: 4, kind: input, shape index: {}]
  %s5 = inlined_call_operand.vmem [shape: f32[2,8,2,2], index: 5, kind: output, shape index: {}]
  %s6 = sld [smem:[#allocation0]]
  $region60: #{policy_forward.1} parent=0
    _
  %s8 = ssub.s32 1, %s6
  %s9 = scalar_select 0, %s8, %s6
  loop: start=0, step=1, limit=4
  $region2: #{policy_forward.1} parent=0 // loop_pre_header
    _
  $region3: #{policy_forward.1} parent=0 // loop_header
    %s11 = sphi 0, %s15
    %p12 = scmp.ge.s32.totalorder %s11, 4
    %s21 = sphi 0, %s23
    %s24 = sphi 0, %s21
    %s25 = sphi 0, %s24
    %s41 = sphi 0, %s25
    %s45 = sphi 0, %s45
    %s47 = sphi 0, %s45
    %s48 = sphi 0, %s47
    %s62 = sphi 0, %s48
    %s66 = sphi 0, %s66
    %s68 = sphi 0, %s66
    %s69 = sphi 0, %s68
    %s83 = sphi 0, %s69
    %s87 = sphi 0, %s87
    %s89 = sphi 0, %s87
    %s90 = sphi 0, %s89
    %s104 = sphi 0, %s90
    %s108 = sphi 0, %s108
    %s110 = sphi 0, %s108
    %s111 = sphi 0, %s110
    %s125 = sphi 0, %s111
    %s131 = sphi 0, %s133
    %s134 = sphi 0, %s131
    %s135 = sphi 0, %s134
    %s151 = sphi 0, %s135
  $region4: #{policy_forward.1} parent=0 // loop_header_branch
    %14 = sbr.rel (%p12) target = $region8
  $region5: #{policy_forward.1} parent=0 // loop_body
    %s16 = ssub.s32 %s11, 1
    %s17 = ssub.s32 %s11, 2
    %s18 = sadd.s32 %s11, 1
    %s19 = ssub.s32 %s11, %s18
    %p20 = scmp.eq.s32.totalorder %s19, 0
    %s22 = sadd.s32 %s21, 1
    %s23 = scalar_select %p20, %s21, %s22
    %p26 = pneg %p20
    %p27 = scmp.eq.s32.totalorder %s11, 1
    %p28 = por %p26, %p27
    %p29 = scmp.ne.s32.totalorder %s21, %s24
    %p30 = scmp.eq.s32.totalorder %s11, 0
    %p31 = por %p29, %p30
    %p32 = scmp.ne.s32.totalorder %s21, %s24
    %p33 = scmp.eq.s32.totalorder %s16, 1
    %p34 = por %p32, %p33
    %p35 = scmp.ne.s32.totalorder %s24, %s25
    %p36 = scmp.eq.s32.totalorder %s16, 0
    %p37 = por %p35, %p36
    %p38 = scmp.ne.s32.totalorder %s24, %s25
    %p39 = scmp.eq.s32.totalorder %s17, 1
    %p40 = por %p38, %p39
    %p42 = scmp.ne.s32.totalorder %s25, %s41
    %p43 = scmp.eq.s32.totalorder %s17, 0
    %p44 = por %p42, %p43
    %s46 = sadd.s32 %s45, 1
    %p49 = scmp.eq.s32.totalorder %s11, 1
    %p50 = scmp.ne.s32.totalorder %s45, %s47
    %p51 = scmp.eq.s32.totalorder %s11, 0
    %p52 = por %p50, %p51
    %p53 = scmp.ne.s32.totalorder %s45, %s47
    %p54 = scmp.eq.s32.totalorder %s16, 1
    %p55 = por %p53, %p54
    %p56 = scmp.ne.s32.totalorder %s47, %s48
    %p57 = scmp.eq.s32.totalorder %s16, 0
    %p58 = por %p56, %p57
    %p59 = scmp.ne.s32.totalorder %s47, %s48
    %p60 = scmp.eq.s32.totalorder %s17, 1
    %p61 = por %p59, %p60
    %p63 = scmp.ne.s32.totalorder %s48, %s62
    %p64 = scmp.eq.s32.totalorder %s17, 0
    %p65 = por %p63, %p64
    %s67 = sadd.s32 %s66, 1
    %p70 = scmp.eq.s32.totalorder %s11, 1
    %p71 = scmp.ne.s32.totalorder %s66, %s68
    %p72 = scmp.eq.s32.totalorder %s11, 0
    %p73 = por %p71, %p72
    %p74 = scmp.ne.s32.totalorder %s66, %s68
    %p75 = scmp.eq.s32.totalorder %s16, 1
    %p76 = por %p74, %p75
    %p77 = scmp.ne.s32.totalorder %s68, %s69
    %p78 = scmp.eq.s32.totalorder %s16, 0
    %p79 = por %p77, %p78
    %p80 = scmp.ne.s32.totalorder %s68, %s69
    %p81 = scmp.eq.s32.totalorder %s17, 1
    %p82 = por %p80, %p81
    %p84 = scmp.ne.s32.totalorder %s69, %s83
    %p85 = scmp.eq.s32.totalorder %s17, 0
    %p86 = por %p84, %p85
    %s88 = sadd.s32 %s87, 1
    %p91 = scmp.eq.s32.totalorder %s11, 1
    %p92 = scmp.ne.s32.totalorder %s87, %s89
    %p93 = scmp.eq.s32.totalorder %s11, 0
    %p94 = por %p92, %p93
    %p95 = scmp.ne.s32.totalorder %s87, %s89
    %p96 = scmp.eq.s32.totalorder %s16, 1
    %p97 = por %p95, %p96
    %p98 = scmp.ne.s32.totalorder %s89, %s90
    %p99 = scmp.eq.s32.totalorder %s16, 0
    %p100 = por %p98, %p99
    %p101 = scmp.ne.s32.totalorder %s89, %s90
    %p102 = scmp.eq.s32.totalorder %s17, 1
    %p103 = por %p101, %p102
    %p105 = scmp.ne.s32.totalorder %s90, %s104
    %p106 = scmp.eq.s32.totalorder %s17, 0
    %p107 = por %p105, %p106
    %s109 = sadd.s32 %s108, 1
    %p112 = scmp.eq.s32.totalorder %s11, 1
    %p113 = scmp.ne.s32.totalorder %s108, %s110
    %p114 = scmp.eq.s32.totalorder %s11, 0
    %p115 = por %p113, %p114
    %p116 = scmp.ne.s32.totalorder %s108, %s110
    %p117 = scmp.eq.s32.totalorder %s16, 1
    %p118 = por %p116, %p117
    %p119 = scmp.ne.s32.totalorder %s110, %s111
    %p120 = scmp.eq.s32.totalorder %s16, 0
    %p121 = por %p119, %p120
    %p122 = scmp.ne.s32.totalorder %s110, %s111
    %p123 = scmp.eq.s32.totalorder %s17, 1
    %p124 = por %p122, %p123
    %p126 = scmp.ne.s32.totalorder %s111, %s125
    %p127 = scmp.eq.s32.totalorder %s17, 0
    %p128 = por %p126, %p127
    %s129 = ssub.s32 %s11, %s18
    %p130 = scmp.eq.s32.totalorder %s129, 0
    %s132 = sadd.s32 %s131, 1
    %s133 = scalar_select %p130, %s131, %s132
    %p136 = pneg %p130
    %p137 = scmp.eq.s32.totalorder %s11, 1
    %p138 = por %p136, %p137
    %p139 = scmp.ne.s32.totalorder %s131, %s134
    %p140 = scmp.eq.s32.totalorder %s11, 0
    %p141 = por %p139, %p140
    %p142 = scmp.ne.s32.totalorder %s131, %s134
    %p143 = scmp.eq.s32.totalorder %s16, 1
    %p144 = por %p142, %p143
    %p145 = scmp.ne.s32.totalorder %s134, %s135
    %p146 = scmp.eq.s32.totalorder %s16, 0
    %p147 = por %p145, %p146
    %p148 = scmp.ne.s32.totalorder %s134, %s135
    %p149 = scmp.eq.s32.totalorder %s17, 1
    %p150 = por %p148, %p149
    %p152 = scmp.ne.s32.totalorder %s135, %s151
    %p153 = scmp.eq.s32.totalorder %s17, 0
    %p154 = por %p152, %p153
    %p155 = scmp.le.s32.totalorder 1, %s11
    %p156 = scmp.lt.s32.totalorder %s11, 3
    %p157 = pnand %p155, %p156
    %p158 = pneg %p157
    // Predicated region
    $region9: #{policy_forward.1} parent=5 // pred_check
      _
    $region10: #{policy_forward.1} parent=5 // pred_check_branch
      %160 = sbr.rel (%p157) target = $region12
    $region11: #{policy_forward.1} parent=5 // pred_region
      %s161 = ssub.s32 %s11, 1
      // Predicated region
      $region13: #{policy_forward.1} parent=11 // pred_check
        %p162 = pneg %p58
      $region14: #{policy_forward.1} parent=11 // pred_check_branch
        %164 = sbr.rel (%p162) target = $region16
      $region15: #{policy_forward.1} parent=11 // pred_region
        _
      $region16: #{policy_forward.1} parent=11 // pred_fallthru
        _
      // Predicated region
      $region17: #{policy_forward.1} parent=11 // pred_check
        %p165 = pneg %p79
      $region18: #{policy_forward.1} parent=11 // pred_check_branch
        %167 = sbr.rel (%p165) target = $region20
      $region19: #{policy_forward.1} parent=11 // pred_region
        _
      $region20: #{policy_forward.1} parent=11 // pred_fallthru
        _
      // Predicated region
      $region21: #{policy_forward.1} parent=11 // pred_check
        %p168 = pneg %p100
      $region22: #{policy_forward.1} parent=11 // pred_check_branch
        %170 = sbr.rel (%p168) target = $region24
      $region23: #{policy_forward.1} parent=11 // pred_region
        _
      $region24: #{policy_forward.1} parent=11 // pred_fallthru
        _
      // Predicated region
      $region25: #{policy_forward.1} parent=11 // pred_check
        %p171 = pneg %p121
      $region26: #{policy_forward.1} parent=11 // pred_check_branch
        %173 = sbr.rel (%p171) target = $region28
      $region27: #{policy_forward.1} parent=11 // pred_region
        _
      $region28: #{policy_forward.1} parent=11 // pred_fallthru
        _
    $region12: #{policy_forward.1} parent=5 // pred_fallthru
      _
    %p174 = scmp.lt.s32.totalorder %s11, 2
    // Predicated region
    $region29: #{policy_forward.1} parent=5 // pred_check
      %p175 = pneg %p174
    $region30: #{policy_forward.1} parent=5 // pred_check_branch
      %177 = sbr.rel (%p175) target = $region32
    $region31: #{policy_forward.1} parent=5 // pred_region
      // Predicated region
      $region33: #{policy_forward.1} parent=31 // pred_check
        %p178 = pneg %p31
      $region34: #{policy_forward.1} parent=31 // pred_check_branch
        %180 = sbr.rel (%p178) target = $region36
      $region35: #{policy_forward.1} parent=31 // pred_region
        %p181 = scmp.lt.s32.totalorder %s11, 1
        %s182 = scalar_select %p181, %s11, 1
        %s183 = smul.addr %s182, 4
        %s184 = scalar_lea.vmem %s0, %s183
      $region36: #{policy_forward.1} parent=31 // pred_fallthru
        _
    $region32: #{policy_forward.1} parent=5 // pred_fallthru
      _
    %p185 = scmp.le.s32.totalorder 1, %s11
    %p186 = scmp.lt.s32.totalorder %s11, 3
    %p187 = pnand %p185, %p186
    %p188 = pneg %p187
    // Predicated region
    $region37: #{policy_forward.1} parent=5 // pred_check
      _
    $region38: #{policy_forward.1} parent=5 // pred_check_branch
      %190 = sbr.rel (%p187) target = $region40
    $region39: #{policy_forward.1} parent=5 // pred_region
      %s191 = ssub.s32 %s11, 1
      %p192 = scmp.lt.s32.totalorder %s16, 1
      %s193 = scalar_select %p192, %s16, 1
      %s194 = smul.addr %s193, 4
      %s195 = scalar_lea.vmem %s0, %s194
      %p196 = pneg %p37
      %p197 = pneg %p34
      %p198 = pneg %p58
      %p199 = pneg %p55
      %p200 = pneg %p79
      %p201 = pneg %p76
      %p202 = pneg %p100
      %p203 = pneg %p97
      %p204 = pneg %p121
      %p205 = pneg %p118
      %p206 = pneg %p147
      %p207 = pneg %p144
      %p208 = scmp.lt.s32.totalorder %s16, 1
      %s209 = scalar_select %p208, %s16, 1
      %s210 = smul.addr %s209, 8
      %s211 = smul.addr %s210, 2
      %s212 = scalar_lea.vmem %s5, %s211
      %p213 = scmp.lt.s32.totalorder %s16, 1
      %s214 = scalar_select %p213, %s16, 1
      %s215 = smul.addr %s214, 4
      %s216 = scalar_lea.vmem %s0, %s215
      %p217 = scmp.lt.s32.totalorder %s16, 1
      %s218 = scalar_select %p217, %s16, 1
      %s219 = smul.addr %s218, 8
      %s220 = smul.addr %s219, 2
      %s221 = scalar_lea.vmem %s5, %s220
      %v223 = vld [vmem:[%s216] sm:$0xf]
      %v224 = vld [vmem:[%s1] sm:$0xff]
      %v225 = vld [vmem:[%s1 + $0x8] sm:$0xff]
      %v226 = vld [vmem:[%s1 + $0x10] sm:$0xff]
      %v227 = vld [vmem:[%s1 + $0x18] sm:$0xff]
      %v228 = vld [vmem:[%s1 + $0x20] sm:$0xff]
      %v229 = vld [vmem:[%s1 + $0x28] sm:$0xff]
      %v230 = vld [vmem:[%s1 + $0x30] sm:$0xff]
      %v231 = vld [vmem:[%s1 + $0x38] sm:$0xff]
      %v232 = vld [vmem:[%s1 + $0x40] sm:$0xff]
      %v233 = vld [vmem:[%s1 + $0x48] sm:$0xff]
      %v234 = vld [vmem:[%s1 + $0x50] sm:$0xff]
      %v235 = vld [vmem:[%s1 + $0x58] sm:$0xff]
      %v236 = vld [vmem:[%s1 + $0x60] sm:$0xff]
      %v237 = vld [vmem:[%s1 + $0x68] sm:$0xff]
      %v238 = vld [vmem:[%s1 + $0x70] sm:$0xff]
      %v239 = vld [vmem:[%s1 + $0x78] sm:$0xff]
      %v240 = vld [vmem:[%s2] sm:$0xff]
      %v241 = vld [vmem:[%s2 + $0x8] sm:$0xff]
      %v242 = vld [vmem:[%s2 + $0x10] sm:$0xff]
      %v243 = vld [vmem:[%s2 + $0x18] sm:$0xff]
      %v244 = vld [vmem:[%s2 + $0x20] sm:$0xff]
      %v245 = vld [vmem:[%s2 + $0x28] sm:$0xff]
      %v246 = vld [vmem:[%s2 + $0x30] sm:$0xff]
      %v247 = vld [vmem:[%s2 + $0x38] sm:$0xff]
      %v248 = vld [vmem:[%s2 + $0x40] sm:$0xff]
      %v249 = vld [vmem:[%s2 + $0x48] sm:$0xff]
      %v250 = vld [vmem:[%s2 + $0x50] sm:$0xff]
      %v251 = vld [vmem:[%s2 + $0x58] sm:$0xff]
      %v252 = vld [vmem:[%s2 + $0x60] sm:$0xff]
      %v253 = vld [vmem:[%s2 + $0x68] sm:$0xff]
      %v254 = vld [vmem:[%s2 + $0x70] sm:$0xff]
      %v255 = vld [vmem:[%s2 + $0x78] sm:$0xff]
      %257 = vset.pattern.permute.xlu0 0
      %258 = vperm.xlu0 %257, %v224
      %v259 = vpop.permute.xlu0 %258
      %262 = vset.pattern.permute.xlu0 0
      %263 = vperm.xlu0 %262, %v225
      %v264 = vpop.permute.xlu0 %263
      %267 = vset.pattern.permute.xlu0 0
      %268 = vperm.xlu0 %267, %v226
      %v269 = vpop.permute.xlu0 %268
      %272 = vset.pattern.permute.xlu0 0
      %273 = vperm.xlu0 %272, %v227
      %v274 = vpop.permute.xlu0 %273
      %277 = vset.pattern.permute.xlu0 0
      %278 = vperm.xlu0 %277, %v228
      %v279 = vpop.permute.xlu0 %278
      %282 = vset.pattern.permute.xlu0 0
      %283 = vperm.xlu0 %282, %v229
      %v284 = vpop.permute.xlu0 %283
      %287 = vset.pattern.permute.xlu0 0
      %288 = vperm.xlu0 %287, %v230
      %v289 = vpop.permute.xlu0 %288
      %292 = vset.pattern.permute.xlu0 0
      %293 = vperm.xlu0 %292, %v231
      %v294 = vpop.permute.xlu0 %293
      %297 = vset.pattern.permute.xlu0 0
      %298 = vperm.xlu0 %297, %v232
      %v299 = vpop.permute.xlu0 %298
      %302 = vset.pattern.permute.xlu0 0
      %303 = vperm.xlu0 %302, %v233
      %v304 = vpop.permute.xlu0 %303
      %307 = vset.pattern.permute.xlu0 0
      %308 = vperm.xlu0 %307, %v234
      %v309 = vpop.permute.xlu0 %308
      %312 = vset.pattern.permute.xlu0 0
      %313 = vperm.xlu0 %312, %v235
      %v314 = vpop.permute.xlu0 %313
      %317 = vset.pattern.permute.xlu0 0
      %318 = vperm.xlu0 %317, %v236
      %v319 = vpop.permute.xlu0 %318
      %322 = vset.pattern.permute.xlu0 0
      %323 = vperm.xlu0 %322, %v237
      %v324 = vpop.permute.xlu0 %323
      %327 = vset.pattern.permute.xlu0 0
      %328 = vperm.xlu0 %327, %v238
      %v329 = vpop.permute.xlu0 %328
      %332 = vset.pattern.permute.xlu0 0
      %333 = vperm.xlu0 %332, %v239
      %v334 = vpop.permute.xlu0 %333
      %v336 = vlaneseq
      %v337 = vshrl.u32 %v336, 7
      %v338 = vsub.s32 0, %v337
      %v339 = vrot.slane %v223, %v338
      %v340 = vmul.f32 %v259, %v339
      %v341 = vmul.f32 %v264, %v339
      %v342 = vmul.f32 %v269, %v339
      %v343 = vmul.f32 %v274, %v339
      %v344 = vmul.f32 %v279, %v339
      %v345 = vmul.f32 %v284, %v339
      %v346 = vmul.f32 %v289, %v339
      %v347 = vmul.f32 %v294, %v339
      %v348 = vmul.f32 %v299, %v339
      %v349 = vmul.f32 %v304, %v339
      %v350 = vmul.f32 %v309, %v339
      %v351 = vmul.f32 %v314, %v339
      %v352 = vmul.f32 %v319, %v339
      %v353 = vmul.f32 %v324, %v339
      %v354 = vmul.f32 %v329, %v339
      %v355 = vmul.f32 %v334, %v339
      %357 = vset.pattern.permute.xlu0 0
      %358 = vperm.xlu0 %357, %v240
      %v359 = vpop.permute.xlu0 %358
      %362 = vset.pattern.permute.xlu0 0
      %363 = vperm.xlu0 %362, %v241
      %v364 = vpop.permute.xlu0 %363
      %367 = vset.pattern.permute.xlu0 0
      %368 = vperm.xlu0 %367, %v242
      %v369 = vpop.permute.xlu0 %368
      %372 = vset.pattern.permute.xlu0 0
      %373 = vperm.xlu0 %372, %v243
      %v374 = vpop.permute.xlu0 %373
      %377 = vset.pattern.permute.xlu0 0
      %378 = vperm.xlu0 %377, %v244
      %v379 = vpop.permute.xlu0 %378
      %382 = vset.pattern.permute.xlu0 0
      %383 = vperm.xlu0 %382, %v245
      %v384 = vpop.permute.xlu0 %383
      %387 = vset.pattern.permute.xlu0 0
      %388 = vperm.xlu0 %387, %v246
      %v389 = vpop.permute.xlu0 %388
      %392 = vset.pattern.permute.xlu0 0
      %393 = vperm.xlu0 %392, %v247
      %v394 = vpop.permute.xlu0 %393
      %397 = vset.pattern.permute.xlu0 0
      %398 = vperm.xlu0 %397, %v248
      %v399 = vpop.permute.xlu0 %398
      %402 = vset.pattern.permute.xlu0 0
      %403 = vperm.xlu0 %402, %v249
      %v404 = vpop.permute.xlu0 %403
      %407 = vset.pattern.permute.xlu0 0
      %408 = vperm.xlu0 %407, %v250
      %v409 = vpop.permute.xlu0 %408
      %412 = vset.pattern.permute.xlu0 0
      %413 = vperm.xlu0 %412, %v251
      %v414 = vpop.permute.xlu0 %413
      %417 = vset.pattern.permute.xlu0 0
      %418 = vperm.xlu0 %417, %v252
      %v419 = vpop.permute.xlu0 %418
      %422 = vset.pattern.permute.xlu0 0
      %423 = vperm.xlu0 %422, %v253
      %v424 = vpop.permute.xlu0 %423
      %427 = vset.pattern.permute.xlu0 0
      %428 = vperm.xlu0 %427, %v254
      %v429 = vpop.permute.xlu0 %428
      %432 = vset.pattern.permute.xlu0 0
      %433 = vperm.xlu0 %432, %v255
      %v434 = vpop.permute.xlu0 %433
      %v436 = vadd.f32 %v359, %v340
      %v437 = vadd.f32 %v364, %v341
      %v438 = vadd.f32 %v369, %v342
      %v439 = vadd.f32 %v374, %v343
      %v440 = vadd.f32 %v379, %v344
      %v441 = vadd.f32 %v384, %v345
      %v442 = vadd.f32 %v389, %v346
      %v443 = vadd.f32 %v394, %v347
      %v444 = vadd.f32 %v399, %v348
      %v445 = vadd.f32 %v404, %v349
      %v446 = vadd.f32 %v409, %v350
      %v447 = vadd.f32 %v414, %v351
      %v448 = vadd.f32 %v419, %v352
      %v449 = vadd.f32 %v424, %v353
      %v450 = vadd.f32 %v429, %v354
      %v451 = vadd.f32 %v434, %v355
      %452 = vset.pattern.permute.xlu0 1
      %453 = vperm.xlu0 %452, %v224
      %v454 = vpop.permute.xlu0 %453
      %456 = vset.pattern.permute.xlu0 1
      %457 = vperm.xlu0 %456, %v225
      %v458 = vpop.permute.xlu0 %457
      %460 = vset.pattern.permute.xlu0 1
      %461 = vperm.xlu0 %460, %v226
      %v462 = vpop.permute.xlu0 %461
      %464 = vset.pattern.permute.xlu0 1
      %465 = vperm.xlu0 %464, %v227
      %v466 = vpop.permute.xlu0 %465
      %468 = vset.pattern.permute.xlu0 1
      %469 = vperm.xlu0 %468, %v228
      %v470 = vpop.permute.xlu0 %469
      %472 = vset.pattern.permute.xlu0 1
      %473 = vperm.xlu0 %472, %v229
      %v474 = vpop.permute.xlu0 %473
      %476 = vset.pattern.permute.xlu0 1
      %477 = vperm.xlu0 %476, %v230
      %v478 = vpop.permute.xlu0 %477
      %480 = vset.pattern.permute.xlu0 1
      %481 = vperm.xlu0 %480, %v231
      %v482 = vpop.permute.xlu0 %481
      %484 = vset.pattern.permute.xlu0 1
      %485 = vperm.xlu0 %484, %v232
      %v486 = vpop.permute.xlu0 %485
      %488 = vset.pattern.permute.xlu0 1
      %489 = vperm.xlu0 %488, %v233
      %v490 = vpop.permute.xlu0 %489
      %492 = vset.pattern.permute.xlu0 1
      %493 = vperm.xlu0 %492, %v234
      %v494 = vpop.permute.xlu0 %493
      %496 = vset.pattern.permute.xlu0 1
      %497 = vperm.xlu0 %496, %v235
      %v498 = vpop.permute.xlu0 %497
      %500 = vset.pattern.permute.xlu0 1
      %501 = vperm.xlu0 %500, %v236
      %v502 = vpop.permute.xlu0 %501
      %504 = vset.pattern.permute.xlu0 1
      %505 = vperm.xlu0 %504, %v237
      %v506 = vpop.permute.xlu0 %505
      %508 = vset.pattern.permute.xlu0 1
      %509 = vperm.xlu0 %508, %v238
      %v510 = vpop.permute.xlu0 %509
      %512 = vset.pattern.permute.xlu0 1
      %513 = vperm.xlu0 %512, %v239
      %v514 = vpop.permute.xlu0 %513
      %v516 = vlaneseq
      %v517 = vshrl.u32 %v516, 7
      %v518 = vsub.s32 1, %v517
      %v519 = vrot.slane %v223, %v518
      %v520 = vmul.f32 %v454, %v519
      %v521 = vmul.f32 %v458, %v519
      %v522 = vmul.f32 %v462, %v519
      %v523 = vmul.f32 %v466, %v519
      %v524 = vmul.f32 %v470, %v519
      %v525 = vmul.f32 %v474, %v519
      %v526 = vmul.f32 %v478, %v519
      %v527 = vmul.f32 %v482, %v519
      %v528 = vmul.f32 %v486, %v519
      %v529 = vmul.f32 %v490, %v519
      %v530 = vmul.f32 %v494, %v519
      %v531 = vmul.f32 %v498, %v519
      %v532 = vmul.f32 %v502, %v519
      %v533 = vmul.f32 %v506, %v519
      %v534 = vmul.f32 %v510, %v519
      %v535 = vmul.f32 %v514, %v519
      %v536 = vadd.f32 %v436, %v520
      %v537 = vadd.f32 %v437, %v521
      %v538 = vadd.f32 %v438, %v522
      %v539 = vadd.f32 %v439, %v523
      %v540 = vadd.f32 %v440, %v524
      %v541 = vadd.f32 %v441, %v525
      %v542 = vadd.f32 %v442, %v526
      %v543 = vadd.f32 %v443, %v527
      %v544 = vadd.f32 %v444, %v528
      %v545 = vadd.f32 %v445, %v529
      %v546 = vadd.f32 %v446, %v530
      %v547 = vadd.f32 %v447, %v531
      %v548 = vadd.f32 %v448, %v532
      %v549 = vadd.f32 %v449, %v533
      %v550 = vadd.f32 %v450, %v534
      %v551 = vadd.f32 %v451, %v535
      %552 = vset.pattern.permute.xlu0 2
      %553 = vperm.xlu0 %552, %v224
      %v554 = vpop.permute.xlu0 %553
      %556 = vset.pattern.permute.xlu0 2
      %557 = vperm.xlu0 %556, %v225
      %v558 = vpop.permute.xlu0 %557
      %560 = vset.pattern.permute.xlu0 2
      %561 = vperm.xlu0 %560, %v226
      %v562 = vpop.permute.xlu0 %561
      %564 = vset.pattern.permute.xlu0 2
      %565 = vperm.xlu0 %564, %v227
      %v566 = vpop.permute.xlu0 %565
      %568 = vset.pattern.permute.xlu0 2
      %569 = vperm.xlu0 %568, %v228
      %v570 = vpop.permute.xlu0 %569
      %572 = vset.pattern.permute.xlu0 2
      %573 = vperm.xlu0 %572, %v229
      %v574 = vpop.permute.xlu0 %573
      %576 = vset.pattern.permute.xlu0 2
      %577 = vperm.xlu0 %576, %v230
      %v578 = vpop.permute.xlu0 %577
      %580 = vset.pattern.permute.xlu0 2
      %581 = vperm.xlu0 %580, %v231
      %v582 = vpop.permute.xlu0 %581
      %584 = vset.pattern.permute.xlu0 2
      %585 = vperm.xlu0 %584, %v232
      %v586 = vpop.permute.xlu0 %585
      %588 = vset.pattern.permute.xlu0 2
      %589 = vperm.xlu0 %588, %v233
      %v590 = vpop.permute.xlu0 %589
      %592 = vset.pattern.permute.xlu0 2
      %593 = vperm.xlu0 %592, %v234
      %v594 = vpop.permute.xlu0 %593
      %596 = vset.pattern.permute.xlu0 2
      %597 = vperm.xlu0 %596, %v235
      %v598 = vpop.permute.xlu0 %597
      %600 = vset.pattern.permute.xlu0 2
      %601 = vperm.xlu0 %600, %v236
      %v602 = vpop.permute.xlu0 %601
      %604 = vset.pattern.permute.xlu0 2
      %605 = vperm.xlu0 %604, %v237
      %v606 = vpop.permute.xlu0 %605
      %608 = vset.pattern.permute.xlu0 2
      %609 = vperm.xlu0 %608, %v238
      %v610 = vpop.permute.xlu0 %609
      %612 = vset.pattern.permute.xlu0 2
      %613 = vperm.xlu0 %612, %v239
      %v614 = vpop.permute.xlu0 %613
      %v616 = vlaneseq
      %v617 = vshrl.u32 %v616, 7
      %v618 = vsub.s32 2, %v617
      %v619 = vrot.slane %v223, %v618
      %v620 = vmul.f32 %v554, %v619
      %v621 = vmul.f32 %v558, %v619
      %v622 = vmul.f32 %v562, %v619
      %v623 = vmul.f32 %v566, %v619
      %v624 = vmul.f32 %v570, %v619
      %v625 = vmul.f32 %v574, %v619
      %v626 = vmul.f32 %v578, %v619
      %v627 = vmul.f32 %v582, %v619
      %v628 = vmul.f32 %v586, %v619
      %v629 = vmul.f32 %v590, %v619
      %v630 = vmul.f32 %v594, %v619
      %v631 = vmul.f32 %v598, %v619
      %v632 = vmul.f32 %v602, %v619
      %v633 = vmul.f32 %v606, %v619
      %v634 = vmul.f32 %v610, %v619
      %v635 = vmul.f32 %v614, %v619
      %v636 = vadd.f32 %v536, %v620
      %v637 = vadd.f32 %v537, %v621
      %v638 = vadd.f32 %v538, %v622
      %v639 = vadd.f32 %v539, %v623
      %v640 = vadd.f32 %v540, %v624
      %v641 = vadd.f32 %v541, %v625
      %v642 = vadd.f32 %v542, %v626
      %v643 = vadd.f32 %v543, %v627
      %v644 = vadd.f32 %v544, %v628
      %v645 = vadd.f32 %v545, %v629
      %v646 = vadd.f32 %v546, %v630
      %v647 = vadd.f32 %v547, %v631
      %v648 = vadd.f32 %v548, %v632
      %v649 = vadd.f32 %v549, %v633
      %v650 = vadd.f32 %v550, %v634
      %v651 = vadd.f32 %v551, %v635
      %652 = vset.pattern.permute.xlu0 3
      %653 = vperm.xlu0 %652, %v224
      %v654 = vpop.permute.xlu0 %653
      %656 = vset.pattern.permute.xlu0 3
      %657 = vperm.xlu0 %656, %v225
      %v658 = vpop.permute.xlu0 %657
      %660 = vset.pattern.permute.xlu0 3
      %661 = vperm.xlu0 %660, %v226
      %v662 = vpop.permute.xlu0 %661
      %664 = vset.pattern.permute.xlu0 3
      %665 = vperm.xlu0 %664, %v227
      %v666 = vpop.permute.xlu0 %665
      %668 = vset.pattern.permute.xlu0 3
      %669 = vperm.xlu0 %668, %v228
      %v670 = vpop.permute.xlu0 %669
      %672 = vset.pattern.permute.xlu0 3
      %673 = vperm.xlu0 %672, %v229
      %v674 = vpop.permute.xlu0 %673
      %676 = vset.pattern.permute.xlu0 3
      %677 = vperm.xlu0 %676, %v230
      %v678 = vpop.permute.xlu0 %677
      %680 = vset.pattern.permute.xlu0 3
      %681 = vperm.xlu0 %680, %v231
      %v682 = vpop.permute.xlu0 %681
      %684 = vset.pattern.permute.xlu0 3
      %685 = vperm.xlu0 %684, %v232
      %v686 = vpop.permute.xlu0 %685
      %688 = vset.pattern.permute.xlu0 3
      %689 = vperm.xlu0 %688, %v233
      %v690 = vpop.permute.xlu0 %689
      %692 = vset.pattern.permute.xlu0 3
      %693 = vperm.xlu0 %692, %v234
      %v694 = vpop.permute.xlu0 %693
      %696 = vset.pattern.permute.xlu0 3
      %697 = vperm.xlu0 %696, %v235
      %v698 = vpop.permute.xlu0 %697
      %700 = vset.pattern.permute.xlu0 3
      %701 = vperm.xlu0 %700, %v236
      %v702 = vpop.permute.xlu0 %701
      %704 = vset.pattern.permute.xlu0 3
      %705 = vperm.xlu0 %704, %v237
      %v706 = vpop.permute.xlu0 %705
      %708 = vset.pattern.permute.xlu0 3
      %709 = vperm.xlu0 %708, %v238
      %v710 = vpop.permute.xlu0 %709
      %712 = vset.pattern.permute.xlu0 3
      %713 = vperm.xlu0 %712, %v239
      %v714 = vpop.permute.xlu0 %713
      %v716 = vlaneseq
      %v717 = vshrl.u32 %v716, 7
      %v718 = vsub.s32 3, %v717
      %v719 = vrot.slane %v223, %v718
      %v720 = vmul.f32 %v654, %v719
      %v721 = vmul.f32 %v658, %v719
      %v722 = vmul.f32 %v662, %v719
      %v723 = vmul.f32 %v666, %v719
      %v724 = vmul.f32 %v670, %v719
      %v725 = vmul.f32 %v674, %v719
      %v726 = vmul.f32 %v678, %v719
      %v727 = vmul.f32 %v682, %v719
      %v728 = vmul.f32 %v686, %v719
      %v729 = vmul.f32 %v690, %v719
      %v730 = vmul.f32 %v694, %v719
      %v731 = vmul.f32 %v698, %v719
      %v732 = vmul.f32 %v702, %v719
      %v733 = vmul.f32 %v706, %v719
      %v734 = vmul.f32 %v710, %v719
      %v735 = vmul.f32 %v714, %v719
      %v736 = vadd.f32 %v636, %v720
      %v737 = vadd.f32 %v637, %v721
      %v738 = vadd.f32 %v638, %v722
      %v739 = vadd.f32 %v639, %v723
      %v740 = vadd.f32 %v640, %v724
      %v741 = vadd.f32 %v641, %v725
      %v742 = vadd.f32 %v642, %v726
      %v743 = vadd.f32 %v643, %v727
      %v744 = vadd.f32 %v644, %v728
      %v745 = vadd.f32 %v645, %v729
      %v746 = vadd.f32 %v646, %v730
      %v747 = vadd.f32 %v647, %v731
      %v748 = vadd.f32 %v648, %v732
      %v749 = vadd.f32 %v649, %v733
      %v750 = vadd.f32 %v650, %v734
      %v751 = vadd.f32 %v651, %v735
      %v752 = vmax.f32 %v736, 0.0
      %v753 = vmax.f32 %v737, 0.0
      %v754 = vmax.f32 %v738, 0.0
      %v755 = vmax.f32 %v739, 0.0
      %v756 = vmax.f32 %v740, 0.0
      %v757 = vmax.f32 %v741, 0.0
      %v758 = vmax.f32 %v742, 0.0
      %v759 = vmax.f32 %v743, 0.0
      %v760 = vmax.f32 %v744, 0.0
      %v761 = vmax.f32 %v745, 0.0
      %v762 = vmax.f32 %v746, 0.0
      %v763 = vmax.f32 %v747, 0.0
      %v764 = vmax.f32 %v748, 0.0
      %v765 = vmax.f32 %v749, 0.0
      %v766 = vmax.f32 %v750, 0.0
      %v767 = vmax.f32 %v751, 0.0
      %v768 = vpack.c.bf16 %v753, %v752
      %v769 = vpack.c.bf16 %v755, %v754
      %v770 = vpack.c.bf16 %v757, %v756
      %v771 = vpack.c.bf16 %v759, %v758
      %v772 = vpack.c.bf16 %v761, %v760
      %v773 = vpack.c.bf16 %v763, %v762
      %v774 = vpack.c.bf16 %v765, %v764
      %v775 = vpack.c.bf16 %v767, %v766
      loop: start=0, step=1, limit=5
      $region41: #{policy_forward.1} parent=39 // loop_pre_header
        _
      $region42: #{policy_forward.1} parent=39 // loop_header
        %s777 = sphi 0, %s781
        %p778 = scmp.ge.s32.totalorder %s777, 5
        %v782 = vphi %v768, %v1068
        %v783 = vphi %v769, %v1069
        %v784 = vphi %v770, %v1070
        %v785 = vphi %v771, %v1071
        %v786 = vphi %v772, %v1072
        %v787 = vphi %v773, %v1073
        %v788 = vphi %v774, %v1074
        %v789 = vphi %v775, %v1075
      $region43: #{policy_forward.1} parent=39 // loop_header_branch
        %780 = sbr.rel (%p778) target = $region47
      $region44: #{policy_forward.1} parent=39 // loop_body
        %s790 = smul.u32 %s777, 16
        %s791 = smul.addr %s790, 4
        %s792 = scalar_lea.vmem %s3, %s791
        %v793 = vld [vmem:[%s792] sm:$0xf]
        %v794 = vld [vmem:[%s792 + $0x4] sm:$0xf]
        %v795 = vld [vmem:[%s792 + $0x8] sm:$0xf]
        %v796 = vld [vmem:[%s792 + $0xc] sm:$0xf]
        %v797 = vld [vmem:[%s792 + $0x10] sm:$0xf]
        %v798 = vld [vmem:[%s792 + $0x14] sm:$0xf]
        %v799 = vld [vmem:[%s792 + $0x18] sm:$0xf]
        %v800 = vld [vmem:[%s792 + $0x1c] sm:$0xf]
        %v801 = vld [vmem:[%s792 + $0x20] sm:$0xf]
        %v802 = vld [vmem:[%s792 + $0x24] sm:$0xf]
        %v803 = vld [vmem:[%s792 + $0x28] sm:$0xf]
        %v804 = vld [vmem:[%s792 + $0x2c] sm:$0xf]
        %v805 = vld [vmem:[%s792 + $0x30] sm:$0xf]
        %v806 = vld [vmem:[%s792 + $0x34] sm:$0xf]
        %v807 = vld [vmem:[%s792 + $0x38] sm:$0xf]
        %v808 = vld [vmem:[%s792 + $0x3c] sm:$0xf]
        %s809 = smul.u32 %s777, 128
        %s810 = scalar_lea.vmem %s4, %s809
        %v811 = vld [vmem:[%s810] sm:$0xff]
        %v812 = vld [vmem:[%s810 + $0x8] sm:$0xff]
        %v813 = vld [vmem:[%s810 + $0x10] sm:$0xff]
        %v814 = vld [vmem:[%s810 + $0x18] sm:$0xff]
        %v815 = vld [vmem:[%s810 + $0x20] sm:$0xff]
        %v816 = vld [vmem:[%s810 + $0x28] sm:$0xff]
        %v817 = vld [vmem:[%s810 + $0x30] sm:$0xff]
        %v818 = vld [vmem:[%s810 + $0x38] sm:$0xff]
        %v819 = vld [vmem:[%s810 + $0x40] sm:$0xff]
        %v820 = vld [vmem:[%s810 + $0x48] sm:$0xff]
        %v821 = vld [vmem:[%s810 + $0x50] sm:$0xff]
        %v822 = vld [vmem:[%s810 + $0x58] sm:$0xff]
        %v823 = vld [vmem:[%s810 + $0x60] sm:$0xff]
        %v824 = vld [vmem:[%s810 + $0x68] sm:$0xff]
        %v825 = vld [vmem:[%s810 + $0x70] sm:$0xff]
        %v826 = vld [vmem:[%s810 + $0x78] sm:$0xff]
        %828 = vset.pattern.permute.xlu0 0
        %829 = vperm.xlu0 %828, %v811
        %v830 = vpop.permute.xlu0 %829
        %833 = vset.pattern.permute.xlu0 0
        %834 = vperm.xlu0 %833, %v812
        %v835 = vpop.permute.xlu0 %834
        %838 = vset.pattern.permute.xlu0 0
        %839 = vperm.xlu0 %838, %v813
        %v840 = vpop.permute.xlu0 %839
        %843 = vset.pattern.permute.xlu0 0
        %844 = vperm.xlu0 %843, %v814
        %v845 = vpop.permute.xlu0 %844
        %848 = vset.pattern.permute.xlu0 0
        %849 = vperm.xlu0 %848, %v815
        %v850 = vpop.permute.xlu0 %849
        %853 = vset.pattern.permute.xlu0 0
        %854 = vperm.xlu0 %853, %v816
        %v855 = vpop.permute.xlu0 %854
        %858 = vset.pattern.permute.xlu0 0
        %859 = vperm.xlu0 %858, %v817
        %v860 = vpop.permute.xlu0 %859
        %863 = vset.pattern.permute.xlu0 0
        %864 = vperm.xlu0 %863, %v818
        %v865 = vpop.permute.xlu0 %864
        %868 = vset.pattern.permute.xlu0 0
        %869 = vperm.xlu0 %868, %v819
        %v870 = vpop.permute.xlu0 %869
        %873 = vset.pattern.permute.xlu0 0
        %874 = vperm.xlu0 %873, %v820
        %v875 = vpop.permute.xlu0 %874
        %878 = vset.pattern.permute.xlu0 0
        %879 = vperm.xlu0 %878, %v821
        %v880 = vpop.permute.xlu0 %879
        %883 = vset.pattern.permute.xlu0 0
        %884 = vperm.xlu0 %883, %v822
        %v885 = vpop.permute.xlu0 %884
        %888 = vset.pattern.permute.xlu0 0
        %889 = vperm.xlu0 %888, %v823
        %v890 = vpop.permute.xlu0 %889
        %893 = vset.pattern.permute.xlu0 0
        %894 = vperm.xlu0 %893, %v824
        %v895 = vpop.permute.xlu0 %894
        %898 = vset.pattern.permute.xlu0 0
        %899 = vperm.xlu0 %898, %v825
        %v900 = vpop.permute.xlu0 %899
        %903 = vset.pattern.permute.xlu0 0
        %904 = vperm.xlu0 %903, %v826
        %v905 = vpop.permute.xlu0 %904
        %v923 = vunpack.c.l.b16 %v793
        %v924 = vunpack.c.l.b16 %v794
        %v925 = vunpack.c.l.b16 %v795
        %v926 = vunpack.c.l.b16 %v796
        %v927 = vunpack.c.l.b16 %v797
        %v928 = vunpack.c.l.b16 %v798
        %v929 = vunpack.c.l.b16 %v799
        %v930 = vunpack.c.l.b16 %v800
        %v931 = vunpack.c.l.b16 %v801
        %v932 = vunpack.c.l.b16 %v802
        %v933 = vunpack.c.l.b16 %v803
        %v934 = vunpack.c.l.b16 %v804
        %v935 = vunpack.c.l.b16 %v805
        %v936 = vunpack.c.l.b16 %v806
        %v937 = vunpack.c.l.b16 %v807
        %v938 = vunpack.c.l.b16 %v808
        %v939 = vpack.c.b16 %v924, %v923
        %v940 = vpack.c.b16 %v926, %v925
        %v941 = vpack.c.b16 %v928, %v927
        %v942 = vpack.c.b16 %v930, %v929
        %v943 = vpack.c.b16 %v932, %v931
        %v944 = vpack.c.b16 %v934, %v933
        %v945 = vpack.c.b16 %v936, %v935
        %v946 = vpack.c.b16 %v938, %v937
        %955 = vmatprep.subr.bf16.mxu0 0
        %956 = vmatpush1.bf16.msra.mxu0 %v782
        %957 = vmatprep.subr.bf16.mxu0 0
        %958 = vmatpush1.bf16.msra.mxu0 %v783
        %959 = vmatprep.subr.bf16.mxu0 0
        %960 = vmatpush1.bf16.msra.mxu0 %v784
        %961 = vmatprep.subr.bf16.mxu0 0
        %962 = vmatpush1.bf16.msra.mxu0 %v785
        %963 = vmatprep.subr.bf16.mxu0 0
        %964 = vmatpush1.bf16.msra.mxu0 %v786
        %965 = vmatprep.subr.bf16.mxu0 0
        %966 = vmatpush1.bf16.msra.mxu0 %v787
        %967 = vmatprep.subr.bf16.mxu0 0
        %968 = vmatpush1.bf16.msra.mxu0 %v788
        %969 = vmatprep.subr.bf16.mxu0 0
        %970 = vmatpush1.bf16.msra.mxu0 %v789
        %971 = vmatprep.subr.bf16.mxu0 0
        %972 = vmatpush1.bf16.msra.mxu0 0
        %973 = vmatprep.subr.bf16.mxu0 0
        %974 = vmatpush1.bf16.msra.mxu0 0
        %975 = vmatprep.subr.bf16.mxu0 0
        %976 = vmatpush1.bf16.msra.mxu0 0
        %977 = vmatprep.subr.bf16.mxu0 0
        %978 = vmatpush1.bf16.msra.mxu0 0
        %979 = vmatprep.subr.bf16.mxu0 0
        %980 = vmatpush1.bf16.msra.mxu0 0
        %981 = vmatprep.subr.bf16.mxu0 0
        %982 = vmatpush1.bf16.msra.mxu0 0
        %983 = vmatprep.subr.bf16.mxu0 0
        %984 = vmatpush1.bf16.msra.mxu0 0
        %985 = vmatprep.subr.bf16.mxu0 0
        %986 = vmatpush1.bf16.msra.mxu0 0
        %987 = vmatprep.mubr.bf16.mxu0 0
        %988 = vmatmul.mubr.bf16.gmra.mrb[0].mxu0 %v939
        %v989 = vpop.f32.mrb[0].mxu0
        %v990 = vadd.f32 %v830, %v989
        %v991 = vpop.f32.mrb[0].mxu0
        %v992 = vpop.f32.mrb[0].mxu0
        %v993 = vadd.f32 %v835, %v992
        %v994 = vpop.f32.mrb[0].mxu0
        %995 = vmatprep.mubr.bf16.mxu0 0
        %996 = vmatmul.mubr.bf16.gmra.mrb[0].mxu0 %v940
        %v997 = vpop.f32.mrb[0].mxu0
        %v998 = vadd.f32 %v840, %v997
        %v999 = vpop.f32.mrb[0].mxu0
        %v1000 = vpop.f32.mrb[0].mxu0
        %v1001 = vadd.f32 %v845, %v1000
        %v1002 = vpop.f32.mrb[0].mxu0
        %1003 = vmatprep.mubr.bf16.mxu0 0
        %1004 = vmatmul.mubr.bf16.gmra.mrb[0].mxu0 %v941
        %v1005 = vpop.f32.mrb[0].mxu0
        %v1006 = vadd.f32 %v850, %v1005
        %v1007 = vpop.f32.mrb[0].mxu0
        %v1008 = vpop.f32.mrb[0].mxu0
        %v1009 = vadd.f32 %v855, %v1008
        %v1010 = vpop.f32.mrb[0].mxu0
        %1011 = vmatprep.mubr.bf16.mxu0 0
        %1012 = vmatmul.mubr.bf16.gmra.mrb[0].mxu0 %v942
        %v1013 = vpop.f32.mrb[0].mxu0
        %v1014 = vadd.f32 %v860, %v1013
        %v1015 = vpop.f32.mrb[0].mxu0
        %v1016 = vpop.f32.mrb[0].mxu0
        %v1017 = vadd.f32 %v865, %v1016
        %v1018 = vpop.f32.mrb[0].mxu0
        %1019 = vmatprep.mubr.bf16.mxu0 0
        %1020 = vmatmul.mubr.bf16.gmra.mrb[0].mxu0 %v943
        %v1021 = vpop.f32.mrb[0].mxu0
        %v1022 = vadd.f32 %v870, %v1021
        %v1023 = vpop.f32.mrb[0].mxu0
        %v1024 = vpop.f32.mrb[0].mxu0
        %v1025 = vadd.f32 %v875, %v1024
        %v1026 = vpop.f32.mrb[0].mxu0
        %1027 = vmatprep.mubr.bf16.mxu0 0
        %1028 = vmatmul.mubr.bf16.gmra.mrb[0].mxu0 %v944
        %v1029 = vpop.f32.mrb[0].mxu0
        %v1030 = vadd.f32 %v880, %v1029
        %v1031 = vpop.f32.mrb[0].mxu0
        %v1032 = vpop.f32.mrb[0].mxu0
        %v1033 = vadd.f32 %v885, %v1032
        %v1034 = vpop.f32.mrb[0].mxu0
        %1035 = vmatprep.mubr.bf16.mxu0 0
        %1036 = vmatmul.mubr.bf16.gmra.mrb[0].mxu0 %v945
        %v1037 = vpop.f32.mrb[0].mxu0
        %v1038 = vadd.f32 %v890, %v1037
        %v1039 = vpop.f32.mrb[0].mxu0
        %v1040 = vpop.f32.mrb[0].mxu0
        %v1041 = vadd.f32 %v895, %v1040
        %v1042 = vpop.f32.mrb[0].mxu0
        %1043 = vmatprep.mubr.bf16.mxu0 0
        %1044 = vmatmul.mubr.bf16.gmra.mrb[0].mxu0 %v946
        %v1045 = vpop.f32.mrb[0].mxu0
        %v1046 = vadd.f32 %v900, %v1045
        %v1047 = vpop.f32.mrb[0].mxu0
        %v1048 = vpop.f32.mrb[0].mxu0
        %v1049 = vadd.f32 %v905, %v1048
        %v1050 = vpop.f32.mrb[0].mxu0
        %1051 = vdwg.mxu0
        %v1052 = vmax.f32 %v990, 0.0
        %v1053 = vmax.f32 %v993, 0.0
        %v1054 = vmax.f32 %v998, 0.0
        %v1055 = vmax.f32 %v1001, 0.0
        %v1056 = vmax.f32 %v1006, 0.0
        %v1057 = vmax.f32 %v1009, 0.0
        %v1058 = vmax.f32 %v1014, 0.0
        %v1059 = vmax.f32 %v1017, 0.0
        %v1060 = vmax.f32 %v1022, 0.0
        %v1061 = vmax.f32 %v1025, 0.0
        %v1062 = vmax.f32 %v1030, 0.0
        %v1063 = vmax.f32 %v1033, 0.0
        %v1064 = vmax.f32 %v1038, 0.0
        %v1065 = vmax.f32 %v1041, 0.0
        %v1066 = vmax.f32 %v1046, 0.0
        %v1067 = vmax.f32 %v1049, 0.0
        %v1068 = vpack.c.bf16 %v1053, %v1052
        %v1069 = vpack.c.bf16 %v1055, %v1054
        %v1070 = vpack.c.bf16 %v1057, %v1056
        %v1071 = vpack.c.bf16 %v1059, %v1058
        %v1072 = vpack.c.bf16 %v1061, %v1060
        %v1073 = vpack.c.bf16 %v1063, %v1062
        %v1074 = vpack.c.bf16 %v1065, %v1064
        %v1075 = vpack.c.bf16 %v1067, %v1066
      $region45: #{policy_forward.1} parent=39 // loop_footer
        %s781 = sadd.s32 1, %s777
      $region46: #{policy_forward.1} parent=39 // loop_footer_branch
        %776 = sbr.rel target = $region42
      $region47: #{policy_forward.1} parent=39 // loop_exit
        _
      %s1076 = scalar_lea.vmem %s3, 320
      %v1077 = vld [vmem:[%s1076] sm:$0xf]
      %v1078 = vld [vmem:[%s1076 + $0x4] sm:$0xf]
      %v1079 = vld [vmem:[%s1076 + $0x8] sm:$0xf]
      %v1080 = vld [vmem:[%s1076 + $0xc] sm:$0xf]
      %v1081 = vld [vmem:[%s1076 + $0x10] sm:$0xf]
      %v1082 = vld [vmem:[%s1076 + $0x14] sm:$0xf]
      %v1083 = vld [vmem:[%s1076 + $0x18] sm:$0xf]
      %v1084 = vld [vmem:[%s1076 + $0x1c] sm:$0xf]
      %v1085 = vld [vmem:[%s1076 + $0x20] sm:$0xf]
      %v1086 = vld [vmem:[%s1076 + $0x24] sm:$0xf]
      %v1087 = vld [vmem:[%s1076 + $0x28] sm:$0xf]
      %v1088 = vld [vmem:[%s1076 + $0x2c] sm:$0xf]
      %v1089 = vld [vmem:[%s1076 + $0x30] sm:$0xf]
      %v1090 = vld [vmem:[%s1076 + $0x34] sm:$0xf]
      %v1091 = vld [vmem:[%s1076 + $0x38] sm:$0xf]
      %v1092 = vld [vmem:[%s1076 + $0x3c] sm:$0xf]
      %v1109 = vunpack.c.l.b16 %v1077
      %v1110 = vunpack.c.l.b16 %v1078
      %v1111 = vunpack.c.l.b16 %v1079
      %v1112 = vunpack.c.l.b16 %v1080
      %v1113 = vunpack.c.l.b16 %v1081
      %v1114 = vunpack.c.l.b16 %v1082
      %v1115 = vunpack.c.l.b16 %v1083
      %v1116 = vunpack.c.l.b16 %v1084
      %v1117 = vunpack.c.l.b16 %v1085
      %v1118 = vunpack.c.l.b16 %v1086
      %v1119 = vunpack.c.l.b16 %v1087
      %v1120 = vunpack.c.l.b16 %v1088
      %v1121 = vunpack.c.l.b16 %v1089
      %v1122 = vunpack.c.l.b16 %v1090
      %v1123 = vunpack.c.l.b16 %v1091
      %v1124 = vunpack.c.l.b16 %v1092
      %v1125 = vpack.c.b16 %v1110, %v1109
      %v1126 = vpack.c.b16 %v1112, %v1111
      %v1127 = vpack.c.b16 %v1114, %v1113
      %v1128 = vpack.c.b16 %v1116, %v1115
      %v1129 = vpack.c.b16 %v1118, %v1117
      %v1130 = vpack.c.b16 %v1120, %v1119
      %v1131 = vpack.c.b16 %v1122, %v1121
      %v1132 = vpack.c.b16 %v1124, %v1123
      %1141 = vmatprep.subr.bf16.mxu0 0
      %1142 = vmatpush1.bf16.msra.mxu0 %v782
      %1143 = vmatprep.subr.bf16.mxu0 0
      %1144 = vmatpush1.bf16.msra.mxu0 %v783
      %1145 = vmatprep.subr.bf16.mxu0 0
      %1146 = vmatpush1.bf16.msra.mxu0 %v784
      %1147 = vmatprep.subr.bf16.mxu0 0
      %1148 = vmatpush1.bf16.msra.mxu0 %v785
      %1149 = vmatprep.subr.bf16.mxu0 0
      %1150 = vmatpush1.bf16.msra.mxu0 %v786
      %1151 = vmatprep.subr.bf16.mxu0 0
      %1152 = vmatpush1.bf16.msra.mxu0 %v787
      %1153 = vmatprep.subr.bf16.mxu0 0
      %1154 = vmatpush1.bf16.msra.mxu0 %v788
      %1155 = vmatprep.subr.bf16.mxu0 0
      %1156 = vmatpush1.bf16.msra.mxu0 %v789
      %1157 = vmatprep.subr.bf16.mxu0 0
      %1158 = vmatpush1.bf16.msra.mxu0 0
      %1159 = vmatprep.subr.bf16.mxu0 0
      %1160 = vmatpush1.bf16.msra.mxu0 0
      %1161 = vmatprep.subr.bf16.mxu0 0
      %1162 = vmatpush1.bf16.msra.mxu0 0
      %1163 = vmatprep.subr.bf16.mxu0 0
      %1164 = vmatpush1.bf16.msra.mxu0 0
      %1165 = vmatprep.subr.bf16.mxu0 0
      %1166 = vmatpush1.bf16.msra.mxu0 0
      %1167 = vmatprep.subr.bf16.mxu0 0
      %1168 = vmatpush1.bf16.msra.mxu0 0
      %1169 = vmatprep.subr.bf16.mxu0 0
      %1170 = vmatpush1.bf16.msra.mxu0 0
      %1171 = vmatprep.subr.bf16.mxu0 0
      %1172 = vmatpush1.bf16.msra.mxu0 0
      %1173 = vmatprep.mubr.bf16.mxu0 0
      %1174 = vmatmul.mubr.bf16.gmra.mrb[0].mxu0 %v1125
      %v1175 = vpop.f32.mrb[0].mxu0
      %v1176 = vadd.f32 0.0, %v1175
      %v1177 = vpop.f32.mrb[0].mxu0
      %v1178 = vpop.f32.mrb[0].mxu0
      %v1179 = vpop.f32.mrb[0].mxu0
      %1180 = vmatprep.mubr.bf16.mxu0 0
      %1181 = vmatmul.mubr.bf16.gmra.mrb[0].mxu0 %v1126
      %v1182 = vpop.f32.mrb[0].mxu0
      %v1183 = vpop.f32.mrb[0].mxu0
      %v1184 = vpop.f32.mrb[0].mxu0
      %v1185 = vpop.f32.mrb[0].mxu0
      %1186 = vmatprep.mubr.bf16.mxu0 0
      %1187 = vmatmul.mubr.bf16.gmra.mrb[0].mxu0 %v1127
      %v1188 = vpop.f32.mrb[0].mxu0
      %v1189 = vpop.f32.mrb[0].mxu0
      %v1190 = vpop.f32.mrb[0].mxu0
      %v1191 = vpop.f32.mrb[0].mxu0
      %1192 = vmatprep.mubr.bf16.mxu0 0
      %1193 = vmatmul.mubr.bf16.gmra.mrb[0].mxu0 %v1128
      %v1194 = vpop.f32.mrb[0].mxu0
      %v1195 = vpop.f32.mrb[0].mxu0
      %v1196 = vpop.f32.mrb[0].mxu0
      %v1197 = vpop.f32.mrb[0].mxu0
      %1198 = vmatprep.mubr.bf16.mxu0 0
      %1199 = vmatmul.mubr.bf16.gmra.mrb[0].mxu0 %v1129
      %v1200 = vpop.f32.mrb[0].mxu0
      %v1201 = vpop.f32.mrb[0].mxu0
      %v1202 = vpop.f32.mrb[0].mxu0
      %v1203 = vpop.f32.mrb[0].mxu0
      %1204 = vmatprep.mubr.bf16.mxu0 0
      %1205 = vmatmul.mubr.bf16.gmra.mrb[0].mxu0 %v1130
      %v1206 = vpop.f32.mrb[0].mxu0
      %v1207 = vpop.f32.mrb[0].mxu0
      %v1208 = vpop.f32.mrb[0].mxu0
      %v1209 = vpop.f32.mrb[0].mxu0
      %1210 = vmatprep.mubr.bf16.mxu0 0
      %1211 = vmatmul.mubr.bf16.gmra.mrb[0].mxu0 %v1131
      %v1212 = vpop.f32.mrb[0].mxu0
      %v1213 = vpop.f32.mrb[0].mxu0
      %v1214 = vpop.f32.mrb[0].mxu0
      %v1215 = vpop.f32.mrb[0].mxu0
      %1216 = vmatprep.mubr.bf16.mxu0 0
      %1217 = vmatmul.mubr.bf16.gmra.mrb[0].mxu0 %v1132
      %v1218 = vpop.f32.mrb[0].mxu0
      %v1219 = vpop.f32.mrb[0].mxu0
      %v1220 = vpop.f32.mrb[0].mxu0
      %v1221 = vpop.f32.mrb[0].mxu0
      %1222 = vdwg.mxu0
      %s1223 = scalar_lea.vmem %s4, 640
      %v1224 = vld [vmem:[%s1223] sm:$0xff]
      %1226 = vset.pattern.permute.xlu0 0
      %1227 = vperm.xlu0 %1226, %v1224
      %v1228 = vpop.permute.xlu0 %1227
      %v1230 = vadd.f32 %v1176, %v1228
      %1232 = vrot.lane.b32.xlu0 %v1230, 126
      %v1233 = vpop.permute.xlu0 %1232
      %v1235 = vmax.f32 %v1230, %v1233
      %1236 = vrot.lane.b32.xlu0 %v1230, 124
      %v1237 = vpop.permute.xlu0 %1236
      %v1239 = vmax.f32 %v1235, %v1237
      %1240 = vrot.lane.b32.xlu0 %v1230, 122
      %v1241 = vpop.permute.xlu0 %1240
      %v1243 = vmax.f32 %v1239, %v1241
      %1244 = vrot.lane.b32.xlu0 %v1230, 120
      %v1245 = vpop.permute.xlu0 %1244
      %v1247 = vmax.f32 %v1243, %v1245
      %1248 = vrot.lane.b32.xlu0 %v1230, 118
      %v1249 = vpop.permute.xlu0 %1248
      %v1251 = vmax.f32 %v1247, %v1249
      %1252 = vrot.lane.b32.xlu0 %v1230, 116
      %v1253 = vpop.permute.xlu0 %1252
      %v1255 = vmax.f32 %v1251, %v1253
      %1256 = vrot.lane.b32.xlu0 %v1230, 114
      %v1257 = vpop.permute.xlu0 %1256
      %v1259 = vmax.f32 %v1255, %v1257
      %v1260 = vsub.f32 %v1230, %v1259
      %v1261 = vmul.f32 %v1260, 1.442695
      %v1262 = vpow.pop %v1261
      %1264 = vrot.lane.b32.xlu0 %v1259, 2
      %v1265 = vpop.permute.xlu0 %1264
      %v1267 = vsub.f32 %v1230, %v1265
      %v1268 = vmul.f32 %v1267, 1.442695
      %v1269 = vpow.pop %v1268
      %1270 = vrot.lane.b32.xlu0 %v1259, 4
      %v1271 = vpop.permute.xlu0 %1270
      %v1273 = vsub.f32 %v1230, %v1271
      %v1274 = vmul.f32 %v1273, 1.442695
      %v1275 = vpow.pop %v1274
      %1276 = vrot.lane.b32.xlu0 %v1259, 6
      %v1277 = vpop.permute.xlu0 %1276
      %v1279 = vsub.f32 %v1230, %v1277
      %v1280 = vmul.f32 %v1279, 1.442695
      %v1281 = vpow.pop %v1280
      %1282 = vrot.lane.b32.xlu0 %v1259, 8
      %v1283 = vpop.permute.xlu0 %1282
      %v1285 = vsub.f32 %v1230, %v1283
      %v1286 = vmul.f32 %v1285, 1.442695
      %v1287 = vpow.pop %v1286
      %1288 = vrot.lane.b32.xlu0 %v1259, 10
      %v1289 = vpop.permute.xlu0 %1288
      %v1291 = vsub.f32 %v1230, %v1289
      %v1292 = vmul.f32 %v1291, 1.442695
      %v1293 = vpow.pop %v1292
      %1294 = vrot.lane.b32.xlu0 %v1259, 12
      %v1295 = vpop.permute.xlu0 %1294
      %v1297 = vsub.f32 %v1230, %v1295
      %v1298 = vmul.f32 %v1297, 1.442695
      %v1299 = vpow.pop %v1298
      %1300 = vrot.lane.b32.xlu0 %v1259, 14
      %v1301 = vpop.permute.xlu0 %1300
      %v1303 = vsub.f32 %v1230, %v1301
      %v1304 = vmul.f32 %v1303, 1.442695
      %v1305 = vpow.pop %v1304
      %1307 = vrot.lane.b32.xlu0 %v1269, 126
      %v1308 = vpop.permute.xlu0 %1307
      %v1310 = vadd.f32 %v1262, %v1308
      %1312 = vrot.lane.b32.xlu0 %v1275, 124
      %v1313 = vpop.permute.xlu0 %1312
      %v1315 = vadd.f32 %v1310, %v1313
      %1317 = vrot.lane.b32.xlu0 %v1281, 122
      %v1318 = vpop.permute.xlu0 %1317
      %v1320 = vadd.f32 %v1315, %v1318
      %1322 = vrot.lane.b32.xlu0 %v1287, 120
      %v1323 = vpop.permute.xlu0 %1322
      %v1325 = vadd.f32 %v1320, %v1323
      %1327 = vrot.lane.b32.xlu0 %v1293, 118
      %v1328 = vpop.permute.xlu0 %1327
      %v1330 = vadd.f32 %v1325, %v1328
      %1332 = vrot.lane.b32.xlu0 %v1299, 116
      %v1333 = vpop.permute.xlu0 %1332
      %v1335 = vadd.f32 %v1330, %v1333
      %1337 = vrot.lane.b32.xlu0 %v1305, 114
      %v1338 = vpop.permute.xlu0 %1337
      %v1340 = vadd.f32 %v1335, %v1338
      %v1341 = vrcp.pop %v1340
      %v1342 = vmul.f32 %v1262, %v1341
      %vm1343 = vcmask 9216
      %1344 = vst.msk [vmem:[%s221] sm:$0x3] %vm1343, %v1342
      %1346 = vrot.lane.b32.xlu0 %v1341, 2
      %v1347 = vpop.permute.xlu0 %1346
      %v1349 = vmul.f32 %v1269, %v1347
      %1351 = vrot.lane.b32.xlu0 %v1349, 126
      %v1352 = vpop.permute.xlu0 %1351
      %s1354 = scalar_lea.vmem %s221, 2
      %1355 = vst.msk [vmem:[%s1354] sm:$0x3] %vm1343, %v1352
      %1356 = vrot.lane.b32.xlu0 %v1341, 4
      %v1357 = vpop.permute.xlu0 %1356
      %v1359 = vmul.f32 %v1275, %v1357
      %1361 = vrot.lane.b32.xlu0 %v1359, 124
      %v1362 = vpop.permute.xlu0 %1361
      %s1364 = scalar_lea.vmem %s221, 4
      %1365 = vst.msk [vmem:[%s1364] sm:$0x3] %vm1343, %v1362
      %1366 = vrot.lane.b32.xlu0 %v1341, 6
      %v1367 = vpop.permute.xlu0 %1366
      %v1369 = vmul.f32 %v1281, %v1367
      %1371 = vrot.lane.b32.xlu0 %v1369, 122
      %v1372 = vpop.permute.xlu0 %1371
      %s1374 = scalar_lea.vmem %s221, 6
      %1375 = vst.msk [vmem:[%s1374] sm:$0x3] %vm1343, %v1372
      %1376 = vrot.lane.b32.xlu0 %v1341, 8
      %v1377 = vpop.permute.xlu0 %1376
      %v1379 = vmul.f32 %v1287, %v1377
      %1381 = vrot.lane.b32.xlu0 %v1379, 120
      %v1382 = vpop.permute.xlu0 %1381
      %s1384 = scalar_lea.vmem %s221, 8
      %1385 = vst.msk [vmem:[%s1384] sm:$0x3] %vm1343, %v1382
      %1386 = vrot.lane.b32.xlu0 %v1341, 10
      %v1387 = vpop.permute.xlu0 %1386
      %v1389 = vmul.f32 %v1293, %v1387
      %1391 = vrot.lane.b32.xlu0 %v1389, 118
      %v1392 = vpop.permute.xlu0 %1391
      %s1394 = scalar_lea.vmem %s221, 10
      %1395 = vst.msk [vmem:[%s1394] sm:$0x3] %vm1343, %v1392
      %1396 = vrot.lane.b32.xlu0 %v1341, 12
      %v1397 = vpop.permute.xlu0 %1396
      %v1399 = vmul.f32 %v1299, %v1397
      %1401 = vrot.lane.b32.xlu0 %v1399, 116
      %v1402 = vpop.permute.xlu0 %1401
      %s1404 = scalar_lea.vmem %s221, 12
      %1405 = vst.msk [vmem:[%s1404] sm:$0x3] %vm1343, %v1402
      %1406 = vrot.lane.b32.xlu0 %v1341, 14
      %v1407 = vpop.permute.xlu0 %1406
      %v1409 = vmul.f32 %v1305, %v1407
      %1411 = vrot.lane.b32.xlu0 %v1409, 114
      %v1412 = vpop.permute.xlu0 %1411
      %s1414 = scalar_lea.vmem %s221, 14
      %1415 = vst.msk [vmem:[%s1414] sm:$0x3] %vm1343, %v1412
      %p1416 = scmp.lt.s32.totalorder %s16, 1
      %s1417 = scalar_select %p1416, %s16, 1
      %s1418 = smul.addr %s1417, 8
      %s1419 = smul.addr %s1418, 2
      %s1420 = scalar_lea.vmem %s5, %s1419
      // Predicated region
      $region48: #{policy_forward.1} parent=39 // pred_check
        %p1421 = pneg %p144
      $region49: #{policy_forward.1} parent=39 // pred_check_branch
        %1423 = sbr.rel (%p1421) target = $region51
      $region50: #{policy_forward.1} parent=39 // pred_region
        _
      $region51: #{policy_forward.1} parent=39 // pred_fallthru
        _
    $region40: #{policy_forward.1} parent=5 // pred_fallthru
      _
    %p1424 = scmp.le.s32.totalorder 2, %s11
    // Predicated region
    $region52: #{policy_forward.1} parent=5 // pred_check
      %p1425 = pneg %p1424
    $region53: #{policy_forward.1} parent=5 // pred_check_branch
      %1427 = sbr.rel (%p1425) target = $region55
    $region54: #{policy_forward.1} parent=5 // pred_region
      %s1428 = ssub.s32 %s11, 2
      // Predicated region
      $region56: #{policy_forward.1} parent=54 // pred_check
        %p1429 = pneg %p150
      $region57: #{policy_forward.1} parent=54 // pred_check_branch
        %1431 = sbr.rel (%p1429) target = $region59
      $region58: #{policy_forward.1} parent=54 // pred_region
        %p1432 = scmp.lt.s32.totalorder %s17, 1
        %s1433 = scalar_select %p1432, %s17, 1
        %s1434 = smul.addr %s1433, 8
        %s1435 = smul.addr %s1434, 2
        %s1436 = scalar_lea.vmem %s5, %s1435
      $region59: #{policy_forward.1} parent=54 // pred_fallthru
        _
    $region55: #{policy_forward.1} parent=5 // pred_fallthru
      _
  $region6: #{policy_forward.1} parent=0 // loop_footer
    %s15 = sadd.s32 1, %s11
  $region7: #{policy_forward.1} parent=0 // loop_footer_branch
    %10 = sbr.rel target = $region3
  $region8: #{policy_forward.1} parent=0 // loop_exit
    _

</llo_original>
